<compile_context>
chip_gen: v5e
topology: v5e:2x2
jax: 0.10.0
libtpu: 0.0.40
codegen_flags: <defaults>
</compile_context>

<pallas_src>
import functools

import jax
import jax.numpy as jnp
import numpy as np
from jax import lax
from jax.experimental import pallas as pl
from jax.experimental.pallas import tpu as pltpu

EPS = 0.001
_VMEM_LIMIT = 48 * 1024 * 1024


def _round_up(x, m):
    return ((x + m - 1) // m) * m


# ----------------------------------------------------------------------------
# Pallas kernels
# ----------------------------------------------------------------------------
def _conv_flat_kernel(x_ref, w_ref, scale_ref, shift_ref, o_ref, acc_ref, *,
                      offsets, m, relu):
    """Direct conv on a flattened zero-padded image.

    x_ref   : (Lflat, C)   bf16  flattened padded image (row pitch Wp)
    w_ref   : (T, C, to)   bf16  per-tap weight slabs
    scale/shift : (1, to)  f32   folded BatchNorm
    o_ref   : (m, to)      bf16  flat output (row pitch Wp, garbage cols kept)
    acc_ref : (m, to)      f32   VMEM accumulator
    """
    for t, off in enumerate(offsets):
        lhs = x_ref[pl.ds(off, m), :]
        d = jnp.dot(lhs, w_ref[t, :, :], preferred_element_type=jnp.float32)
        if t == 0:
            acc_ref[...] = d
        else:
            acc_ref[...] += d
    y = acc_ref[...] * scale_ref[...] + shift_ref[...]
    if relu:
        y = jnp.maximum(y, 0.0)
    o_ref[...] = y.astype(o_ref.dtype)


def _deconv_flat_kernel(x_ref, w_ref, scale_ref, shift_ref, skip_ref, o_ref,
                        acc_ref, *, wp, m):
    """ConvTranspose2d(k=4,s=2,p=1)+BN with fused skip-add+ReLU.

    All 4 output phases (a,b) (output pixel (2i+a, 2j+b)) are computed in one
    grid step; phase (a,b) is a 2x2 stride-1 conv of the 1-padded input with
    tap offsets (a+q, b+r).

    x_ref   : (Lflat, C)      bf16 flattened 1-padded input (row pitch wp)
    w_ref   : (4, 4, C, to)   bf16 [phase, tap, C, O]
    skip_ref: (4, m, to)      bf16 per-phase flat skip
    o_ref   : (4, m, to)      bf16 per-phase flat output
    """
    for a in (0, 1):
        for b in (0, 1):
            ph = a * 2 + b
            for t, (q, r) in enumerate(((0, 0), (0, 1), (1, 0), (1, 1))):
                off = (a + q) * wp + (b + r)
                lhs = x_ref[pl.ds(off, m), :]
                d = jnp.dot(lhs, w_ref[ph, t, :, :],
                            preferred_element_type=jnp.float32)
                if t == 0:
                    acc_ref[...] = d
                else:
                    acc_ref[...] += d
            y = acc_ref[...] * scale_ref[...] + shift_ref[...]
            y = y + skip_ref[ph, :, :].astype(jnp.float32)
            o_ref[ph, :, :] = jnp.maximum(y, 0.0).astype(o_ref.dtype)


# ----------------------------------------------------------------------------
# Conv / deconv wrappers
# ----------------------------------------------------------------------------
def conv_flat(x, w_taps, scale, shift, *, kh, kw, pads, cout, relu=True):
    """Direct stride-1 conv + folded BN (+ReLU).

    x: (N, Hi, Wi, C) NHWC.  w_taps: (kh*kw, C_pad, O_pad) bf16.
    pads = (top, bottom, left, right).  Returns (N, Ho, Wo, cout) bf16.
    """
    N, Hi, Wi, C = x.shape
    pt, pb, pl_, pr = pads
    T, C_pad, O_pad = w_taps.shape
    assert T == kh * kw and C_pad >= C
    Ho = Hi + pt + pb - kh + 1
    Wo = Wi + pl_ + pr - kw + 1
    Wp = _round_up(Wi + pl_ + pr, 8)           # lane-friendly row pitch
    Hp = Hi + pt + pb + 1                      # +1 guard row for tap over-read
    xp = jnp.pad(x.astype(jnp.bfloat16),
                 ((0, 0), (pt, pb + 1), (pl_, Wp - Wi - pl_), (0, C_pad - C)))
    Lflat = Hp * Wp
    xf = xp.reshape(N, Lflat, C_pad)
    M = Ho * Wp
    to = min(O_pad, 512)
    nO = O_pad // to
    offsets = tuple(dy * Wp + dx for dy in range(kh) for dx in range(kw))

    out = pl.pallas_call(
        functools.partial(_conv_flat_kernel, offsets=offsets, m=M, relu=relu),
        out_shape=jax.ShapeDtypeStruct((N, M, O_pad), jnp.bfloat16),
        grid=(N, nO),
        in_specs=[
            pl.BlockSpec((None, Lflat, C_pad), lambda n, j: (n, 0, 0)),
            pl.BlockSpec((T, C_pad, to), lambda n, j: (0, 0, j)),
            pl.BlockSpec((1, to), lambda n, j: (0, j)),
            pl.BlockSpec((1, to), lambda n, j: (0, j)),
        ],
        out_specs=pl.BlockSpec((None, M, to), lambda n, j: (n, 0, j)),
        scratch_shapes=[pltpu.VMEM((M, to), jnp.float32)],
        compiler_params=pltpu.CompilerParams(
            dimension_semantics=("parallel", "parallel"),
            vmem_limit_bytes=_VMEM_LIMIT),
    )(xf, w_taps, scale, shift)
    return out.reshape(N, Ho, Wp, O_pad)[:, :, :Wo, :cout]


def conv_s2d(x, w_taps, scale, shift, *, cout, relu=True):
    """3x3 stride-2 pad-1 conv + BN (+ReLU): space-to-depth then 2x2 stride-1."""
    N, Hi, Wi, C = x.shape
    xp = jnp.pad(x.astype(jnp.bfloat16), ((0, 0), (1, 1), (1, 1), (0, 0)))
    Hp, Wpp = Hi + 2, Wi + 2
    xs = xp.reshape(N, Hp // 2, 2, Wpp // 2, 2, C)
    xs = jnp.transpose(xs, (0, 1, 3, 2, 4, 5)).reshape(N, Hp // 2, Wpp // 2, 4 * C)
    return conv_flat(xs, w_taps, scale, shift, kh=2, kw=2, pads=(0, 0, 0, 0),
                     cout=cout, relu=relu)


def deconv_bn_skip_relu(x, w_taps, scale, shift, skip, *, cout):
    """ConvTranspose2d(k=4,s=2,p=1) + BN + fused (skip add + ReLU)."""
    N, Hi, Wi, C = x.shape
    _, _, C_w, O_pad = w_taps.shape            # (4 phases, 4 taps, C, O_pad)
    assert C_w == C
    Wp = _round_up(Wi + 2, 8)
    Hp = Hi + 2 + 1                            # +1 guard row
    xp = jnp.pad(x.astype(jnp.bfloat16),
                 ((0, 0), (1, Hp - Hi - 1), (1, Wp - Wi - 1), (0, 0)))
    xf = xp.reshape(N, Hp * Wp, C)
    M = Hi * Wp
    to = min(O_pad, 512)
    nO = O_pad // to

    # skip rearranged once into the kernel's per-phase flat layout
    skipr = skip.astype(jnp.bfloat16).reshape(N, Hi, 2, Wi, 2, cout)
    skipr = jnp.transpose(skipr, (0, 2, 4, 1, 3, 5))        # (N, 2, 2, Hi, Wi, c)
    skipr = jnp.pad(skipr, ((0, 0), (0, 0), (0, 0), (0, 0),
                            (0, Wp - Wi), (0, O_pad - cout)))
    skipr = skipr.reshape(N, 4, M, O_pad)

    out = pl.pallas_call(
        functools.partial(_deconv_flat_kernel, wp=Wp, m=M),
        out_shape=jax.ShapeDtypeStruct((N, 4, M, O_pad), jnp.bfloat16),
        grid=(N, nO),
        in_specs=[
            pl.BlockSpec((None, Hp * Wp, C), lambda n, j: (n, 0, 0)),
            pl.BlockSpec((4, 4, C, to), lambda n, j: (0, 0, 0, j)),
            pl.BlockSpec((1, to), lambda n, j: (0, j)),
            pl.BlockSpec((1, to), lambda n, j: (0, j)),
            pl.BlockSpec((None, 4, M, to), lambda n, j: (n, 0, 0, j)),
        ],
        out_specs=pl.BlockSpec((None, 4, M, to), lambda n, j: (n, 0, 0, j)),
        scratch_shapes=[pltpu.VMEM((M, to), jnp.float32)],
        compiler_params=pltpu.CompilerParams(
            dimension_semantics=("parallel", "parallel"),
            vmem_limit_bytes=_VMEM_LIMIT),
    )(xf, w_taps, scale, shift, skipr)

    out = out.reshape(N, 2, 2, Hi, Wp, O_pad)[:, :, :, :, :Wi, :cout]
    out = jnp.transpose(out, (0, 3, 1, 4, 2, 5)).reshape(N, 2 * Hi, 2 * Wi, cout)
    return out


# ----------------------------------------------------------------------------
# Parameter init (BN folded, weights pre-converted to per-tap bf16 slabs)
# ----------------------------------------------------------------------------
def _fold_bn(gamma, beta, mean, var):
    scale = gamma / jnp.sqrt(var + EPS)
    shift = beta - mean * scale
    return scale, shift


def _pad_cols(v, o_pad):
    v = v.reshape(1, -1).astype(jnp.float32)
    return jnp.pad(v, ((0, 0), (0, o_pad - v.shape[1])))


def _conv_taps(w, o_pad):
    """(O, C, kh, kw) torch Conv2d weight -> (kh*kw, C_pad, o_pad) bf16."""
    O, C, kh, kw = w.shape
    c_pad = _round_up(C, 8)
    t = jnp.transpose(w, (2, 3, 1, 0)).reshape(kh * kw, C, O)
    t = jnp.pad(t, ((0, 0), (0, c_pad - C), (0, o_pad - O)))
    return t.astype(jnp.bfloat16)


def _conv_s2d_taps(w, o_pad):
    """(O, C, 3, 3) stride-2 Conv2d weight -> (4, 4*C, o_pad) taps for the
    equivalent 2x2 stride-1 conv over the space-to-depth input."""
    O, C, _, _ = w.shape
    wf = jnp.zeros((O, C, 4, 4), w.dtype).at[:, :, :3, :3].set(w)
    t = jnp.transpose(wf, (2, 3, 1, 0)).reshape(2, 2, 2, 2, C, O)   # [a,py,b,px,c,o]
    t = jnp.transpose(t, (0, 2, 1, 3, 4, 5)).reshape(4, 4 * C, O)   # [(a,b),(py,px,c),o]
    t = jnp.pad(t, ((0, 0), (0, 0), (0, o_pad - O)))
    return t.astype(jnp.bfloat16)


def _deconv_taps(w_t, o_pad):
    """(C, O, 4, 4) torch ConvTranspose2d weight -> (4, 4, C, o_pad):
    [phase(a,b), tap(q,r), c, o]; tap (q,r) of phase (a,b) reads the 1-padded
    input at (i+a+q, j+b+r) and multiplies weight w_t[:, :, 3-a-2q, 3-b-2r]."""
    C, O, _, _ = w_t.shape
    t = jnp.transpose(w_t[:, :, ::-1, ::-1], (2, 3, 0, 1))            # [ky',kx',c,o]
    t = t.reshape(2, 2, 2, 2, C, O)                                   # [q,a,r,b,c,o]
    t = jnp.transpose(t, (1, 3, 0, 2, 4, 5)).reshape(4, 4, C, O)      # [(a,b),(q,r),c,o]
    t = jnp.pad(t, ((0, 0), (0, 0), (0, 0), (0, o_pad - O)))
    return t.astype(jnp.bfloat16)


def _bn_params(kg, kb, cout):
    gamma = 1.0 + 0.1 * jax.random.normal(kg, (cout,), jnp.float32)
    beta = 0.1 * jax.random.normal(kb, (cout,), jnp.float32)
    return _fold_bn(gamma, beta, jnp.zeros((cout,), jnp.float32),
                    jnp.ones((cout,), jnp.float32))


def init_conv_block(key, cin, cout, k, stride):
    kw_, kg, kb = jax.random.split(key, 3)
    fan_in = cin * k * k
    w = jax.random.normal(kw_, (cout, cin, k, k), jnp.float32) / np.sqrt(fan_in)
    scale, shift = _bn_params(kg, kb, cout)
    o_pad = _round_up(cout, 128)
    taps = _conv_taps(w, o_pad) if stride == 1 else _conv_s2d_taps(w, o_pad)
    return {"w": taps, "scale": _pad_cols(scale, o_pad),
            "shift": _pad_cols(shift, o_pad)}


def init_deconv_block(key, cin, cout):
    kw_, kg, kb = jax.random.split(key, 3)
    w_t = jax.random.normal(kw_, (cin, cout, 4, 4), jnp.float32) / np.sqrt(cin * 16)
    scale, shift = _bn_params(kg, kb, cout)
    o_pad = _round_up(cout, 128)
    return {"w": _deconv_taps(w_t, o_pad), "scale": _pad_cols(scale, o_pad),
            "shift": _pad_cols(shift, o_pad)}


def _make_spec(ni=15, no=3):
    return {
        "f0": ("c", ni, 64, 5, 1), "d1": ("c", 64, 64, 3, 2), "f1": ("c", 64, 128, 3, 1),
        "f2": ("c", 128, 128, 3, 1), "d2": ("c", 128, 256, 3, 2), "f3": ("c", 256, 256, 3, 1),
        "f4": ("c", 256, 256, 3, 1), "f5": ("c", 256, 256, 3, 1), "d3": ("c", 256, 512, 3, 2),
        "f6": ("c", 512, 512, 3, 1), "f7": ("c", 512, 512, 3, 1), "f8": ("c", 512, 512, 3, 1),
        "u1": ("d", 512, 256, 4, 2), "f9": ("c", 256, 256, 3, 1), "f10": ("c", 256, 256, 3, 1),
        "f11": ("c", 256, 256, 3, 1), "u2": ("d", 256, 128, 4, 2), "f12": ("c", 128, 128, 3, 1),
        "f13": ("c", 128, 64, 3, 1), "u3": ("d", 64, 64, 4, 2), "f14": ("c", 64, ni, 3, 1),
        "f15": ("c", ni, no, 3, 1),
    }


_SPEC = _make_spec()


def init_dbn_params(seed=0):
    keys = jax.random.split(jax.random.PRNGKey(seed), len(_SPEC))
    params = {}
    for k_, (name, (kind, cin, cout, ksz, stride)) in zip(keys, _SPEC.items()):
        if kind == "c":
            params[name] = init_conv_block(k_, cin, cout, ksz, stride)
        else:
            params[name] = init_deconv_block(k_, cin, cout)
    return params


# ----------------------------------------------------------------------------
# DBN forward
# ----------------------------------------------------------------------------
def _c(x, params, name, relu=True):
    _, _, cout, k, stride = _SPEC[name]
    p = params[name]
    if stride == 1:
        pad = (k - 1) // 2
        return conv_flat(x, p["w"], p["scale"], p["shift"], kh=k, kw=k,
                         pads=(pad, pad, pad, pad), cout=cout, relu=relu)
    return conv_s2d(x, p["w"], p["scale"], p["shift"], cout=cout, relu=True)


def _dc(x, params, name, skip):
    _, _, cout, _, _ = _SPEC[name]
    p = params[name]
    return deconv_bn_skip_relu(x, p["w"], p["scale"], p["shift"], skip, cout=cout)


def dbn_forward(inputs, params):
    # inputs: (b, n, c, h, w) PyTorch convention
    b, n, c, h, w = inputs.shape
    x = inputs.reshape(b, n * c, h, w)
    assert x.shape[1] == 15
    x = jnp.transpose(x, (0, 2, 3, 1)).astype(jnp.bfloat16)   # NHWC bf16

    f0 = _c(x, params, "f0")
    d1 = _c(f0, params, "d1")
    f1 = _c(d1, params, "f1")
    f2 = _c(f1, params, "f2")
    d2 = _c(f2, params, "d2")
    f3 = _c(d2, params, "f3")
    f4 = _c(f3, params, "f4")
    f5 = _c(f4, params, "f5")
    d3 = _c(f5, params, "d3")
    f6 = _c(d3, params, "f6")
    f7 = _c(f6, params, "f7")
    f8 = _c(f7, params, "f8")
    s1 = _dc(f8, params, "u1", f5)          # ReLU(f5 + u1) fused
    f9 = _c(s1, params, "f9")
    f10 = _c(f9, params, "f10")
    f11 = _c(f10, params, "f11")
    s2 = _dc(f11, params, "u2", f2)         # ReLU(f2 + u2) fused
    f12 = _c(s2, params, "f12")
    f13 = _c(f12, params, "f13")
    s3 = _dc(f13, params, "u3", f0)         # ReLU(f0 + u3) fused
    f14 = _c(s3, params, "f14")
    f15 = _c(f14, params, "f15", relu=False)

    return jnp.transpose(f15.astype(jnp.float32), (0, 3, 1, 2))  # (b, 3, h, w)


# ----------------------------------------------------------------------------
# Built-in numerical self-check of the three fused primitives vs XLA convs.
# Operands are pre-rounded to bf16 so only implementation error remains.
# ----------------------------------------------------------------------------
def _self_check():
    key = jax.random.PRNGKey(7)
    ks = jax.random.split(key, 8)
    q = lambda a: a.astype(jnp.bfloat16).astype(jnp.float32)

    # stride-1 conv + BN + ReLU
    N, H, W, Ci, Co, K = 2, 10, 12, 24, 40, 3
    x = q(jax.random.normal(ks[0], (N, H, W, Ci), jnp.float32))
    w = q(jax.random.normal(ks[1], (Co, Ci, K, K), jnp.float32) / np.sqrt(Ci * K * K))
    scale = 1.0 + 0.1 * jax.random.normal(ks[2], (Co,), jnp.float32)
    shift = 0.1 * jax.random.normal(ks[3], (Co,), jnp.float32)
    o_pad = _round_up(Co, 128)
    got = conv_flat(x, _conv_taps(w, o_pad), _pad_cols(scale, o_pad),
                    _pad_cols(shift, o_pad), kh=K, kw=K, pads=(1, 1, 1, 1),
                    cout=Co, relu=True).astype(jnp.float32)
    ref = lax.conv_general_dilated(x, w, (1, 1), ((1, 1), (1, 1)),
                                   dimension_numbers=("NHWC", "OIHW", "NHWC"))
    ref = jnp.maximum(ref * scale + shift, 0.0)
    err = float(jnp.max(jnp.abs(got - ref)))
    assert err < 0.1, f"stride-1 conv mismatch: {err}"

    # stride-2 conv + BN + ReLU
    got2 = conv_s2d(x, _conv_s2d_taps(w, o_pad), _pad_cols(scale, o_pad),
                    _pad_cols(shift, o_pad), cout=Co).astype(jnp.float32)
    ref2 = lax.conv_general_dilated(x, w, (2, 2), ((1, 1), (1, 1)),
                                    dimension_numbers=("NHWC", "OIHW", "NHWC"))
    ref2 = jnp.maximum(ref2 * scale + shift, 0.0)
    err2 = float(jnp.max(jnp.abs(got2 - ref2)))
    assert err2 < 0.1, f"stride-2 conv mismatch: {err2}"

    # deconv(k=4,s=2,p=1) + BN + skip + ReLU
    Ci2, Co2 = 32, 24
    xd = q(jax.random.normal(ks[4], (N, H, W, Ci2), jnp.float32))
    wt = q(jax.random.normal(ks[5], (Ci2, Co2, 4, 4), jnp.float32) / np.sqrt(Ci2 * 16))
    sk = q(jax.random.normal(ks[6], (N, 2 * H, 2 * W, Co2), jnp.float32))
    scale2 = 1.0 + 0.1 * jax.random.normal(ks[7], (Co2,), jnp.float32)
    shift2 = jnp.full((Co2,), 0.05, jnp.float32)
    o_pad2 = _round_up(Co2, 128)
    got3 = deconv_bn_skip_relu(xd, _deconv_taps(wt, o_pad2),
                               _pad_cols(scale2, o_pad2),
                               _pad_cols(shift2, o_pad2), sk,
                               cout=Co2).astype(jnp.float32)
    w_dir = jnp.transpose(wt, (1, 0, 2, 3))[:, :, ::-1, ::-1]
    ref3 = lax.conv_general_dilated(xd, w_dir, (1, 1), ((2, 2), (2, 2)),
                                    lhs_dilation=(2, 2),
                                    dimension_numbers=("NHWC", "OIHW", "NHWC"))
    ref3 = jnp.maximum(ref3 * scale2 + shift2 + sk, 0.0)
    err3 = float(jnp.max(jnp.abs(got3 - ref3)))
    assert err3 < 0.1, f"deconv mismatch: {err3}"


if __name__ == "__main__":
    _self_check()

    # batch=2, n=5 frames x 3 channels = 15 input channels, 16x16 spatial
    key = jax.random.PRNGKey(0)
    inputs = jax.random.normal(key, (2, 5, 3, 16, 16), jnp.float32)

    params = init_dbn_params(seed=0)

    fwd = jax.jit(dbn_forward)
    out = fwd(inputs, params)
    out = jax.block_until_ready(out)

    assert out.shape == (2, 3, 16, 16), out.shape
    assert bool(jnp.all(jnp.isfinite(out)))
    print("KERNEL_OK")
</pallas_src>

<mosaic_0001>
module attributes {stable_mosaic.version = 11 : i64} {
  func.func @_conv_flat_kernel(%arg0: i32, %arg1: i32, %arg2: memref<1x208x24xbf16, #tpu.memory_space<vmem>>, %arg3: memref<9x24x128xbf16, #tpu.memory_space<vmem>>, %arg4: memref<1x128xf32, #tpu.memory_space<vmem>>, %arg5: memref<1x128xf32, #tpu.memory_space<vmem>>, %arg6: memref<1x160x128xbf16, #tpu.memory_space<vmem>>, %arg7: memref<160x128xf32, #tpu.memory_space<vmem>>) attributes {dimension_semantics = [#tpu.dimension_semantics<parallel>, #tpu.dimension_semantics<parallel>], iteration_bounds = array<i64: 2, 1>, scalar_prefetch = 0 : i64, scratch_operands = 1 : i64, tpu.core_type = #tpu.core_type<tc>, window_params = [{transform_indices = @transform_0, window_bounds = array<i64: 1, 208, 24>}, {transform_indices = @transform_1, window_bounds = array<i64: 9, 24, 128>}, {transform_indices = @transform_2, window_bounds = array<i64: 1, 128>}, {transform_indices = @transform_3, window_bounds = array<i64: 1, 128>}, {transform_indices = @transform_4, window_bounds = array<i64: 1, 160, 128>}]} {
    %c0 = arith.constant 0 : index
    %c0_0 = arith.constant 0 : index
    %c0_1 = arith.constant 0 : index
    %0 = vector.load %arg2[%c0, %c0_0, %c0_1] : memref<1x208x24xbf16, #tpu.memory_space<vmem>>, vector<1x160x24xbf16>
    %1 = vector.shape_cast %0 : vector<1x160x24xbf16> to vector<160x24xbf16>
    %c0_2 = arith.constant 0 : index
    %c0_3 = arith.constant 0 : index
    %c0_4 = arith.constant 0 : index
    %2 = vector.load %arg3[%c0_2, %c0_3, %c0_4] : memref<9x24x128xbf16, #tpu.memory_space<vmem>>, vector<1x24x128xbf16>
    %3 = vector.shape_cast %2 : vector<1x24x128xbf16> to vector<24x128xbf16>
    %cst = arith.constant dense<0.000000e+00> : vector<160x128xf32>
    %4 = tpu.matmul %1, %3, %cst {dimension_numbers = #tpu.dot_dimension_numbers<[1], [0], [0], [1], [0, 0, 1, 1], [], []>} : vector<160x24xbf16>, vector<24x128xbf16>, vector<160x128xf32> -> vector<160x128xf32>
    %c0_5 = arith.constant 0 : index
    %c0_6 = arith.constant 0 : index
    %5 = vector.load %arg7[%c0_5, %c0_6] : memref<160x128xf32, #tpu.memory_space<vmem>>, vector<160x128xf32>
    tpu.vector_store %arg7[%c0_5, %c0_6], %4 {strides = array<i32>} : memref<160x128xf32, #tpu.memory_space<vmem>>, vector<160x128xf32>,
    %c0_7 = arith.constant 0 : index
    %c1 = arith.constant 1 : index
    %c0_8 = arith.constant 0 : index
    %6 = vector.load %arg2[%c0_7, %c1, %c0_8] : memref<1x208x24xbf16, #tpu.memory_space<vmem>>, vector<1x160x24xbf16>
    %7 = vector.shape_cast %6 : vector<1x160x24xbf16> to vector<160x24xbf16>
    %c1_9 = arith.constant 1 : index
    %c0_10 = arith.constant 0 : index
    %c0_11 = arith.constant 0 : index
    %8 = vector.load %arg3[%c1_9, %c0_10, %c0_11] : memref<9x24x128xbf16, #tpu.memory_space<vmem>>, vector<1x24x128xbf16>
    %9 = vector.shape_cast %8 : vector<1x24x128xbf16> to vector<24x128xbf16>
    %cst_12 = arith.constant dense<0.000000e+00> : vector<160x128xf32>
    %10 = tpu.matmul %7, %9, %cst_12 {dimension_numbers = #tpu.dot_dimension_numbers<[1], [0], [0], [1], [0, 0, 1, 1], [], []>} : vector<160x24xbf16>, vector<24x128xbf16>, vector<160x128xf32> -> vector<160x128xf32>
    %c0_13 = arith.constant 0 : index
    %c0_14 = arith.constant 0 : index
    %11 = vector.load %arg7[%c0_13, %c0_14] : memref<160x128xf32, #tpu.memory_space<vmem>>, vector<160x128xf32>
    %12 = arith.addf %11, %10 : vector<160x128xf32>
    %c0_15 = arith.constant 0 : index
    %c0_16 = arith.constant 0 : index
    %13 = vector.load %arg7[%c0_15, %c0_16] : memref<160x128xf32, #tpu.memory_space<vmem>>, vector<160x128xf32>
    tpu.vector_store %arg7[%c0_15, %c0_16], %12 {strides = array<i32>} : memref<160x128xf32, #tpu.memory_space<vmem>>, vector<160x128xf32>,
    %c0_17 = arith.constant 0 : index
    %c2 = arith.constant 2 : index
    %c0_18 = arith.constant 0 : index
    %14 = vector.load %arg2[%c0_17, %c2, %c0_18] : memref<1x208x24xbf16, #tpu.memory_space<vmem>>, vector<1x160x24xbf16>
    %15 = vector.shape_cast %14 : vector<1x160x24xbf16> to vector<160x24xbf16>
    %c2_19 = arith.constant 2 : index
    %c0_20 = arith.constant 0 : index
    %c0_21 = arith.constant 0 : index
    %16 = vector.load %arg3[%c2_19, %c0_20, %c0_21] : memref<9x24x128xbf16, #tpu.memory_space<vmem>>, vector<1x24x128xbf16>
    %17 = vector.shape_cast %16 : vector<1x24x128xbf16> to vector<24x128xbf16>
    %cst_22 = arith.constant dense<0.000000e+00> : vector<160x128xf32>
    %18 = tpu.matmul %15, %17, %cst_22 {dimension_numbers = #tpu.dot_dimension_numbers<[1], [0], [0], [1], [0, 0, 1, 1], [], []>} : vector<160x24xbf16>, vector<24x128xbf16>, vector<160x128xf32> -> vector<160x128xf32>
    %c0_23 = arith.constant 0 : index
    %c0_24 = arith.constant 0 : index
    %19 = vector.load %arg7[%c0_23, %c0_24] : memref<160x128xf32, #tpu.memory_space<vmem>>, vector<160x128xf32>
    %20 = arith.addf %19, %18 : vector<160x128xf32>
    %c0_25 = arith.constant 0 : index
    %c0_26 = arith.constant 0 : index
    %21 = vector.load %arg7[%c0_25, %c0_26] : memref<160x128xf32, #tpu.memory_space<vmem>>, vector<160x128xf32>
    tpu.vector_store %arg7[%c0_25, %c0_26], %20 {strides = array<i32>} : memref<160x128xf32, #tpu.memory_space<vmem>>, vector<160x128xf32>,
    %c0_27 = arith.constant 0 : index
    %c16 = arith.constant 16 : index
    %c0_28 = arith.constant 0 : index
    %22 = vector.load %arg2[%c0_27, %c16, %c0_28] : memref<1x208x24xbf16, #tpu.memory_space<vmem>>, vector<1x160x24xbf16>
    %23 = vector.shape_cast %22 : vector<1x160x24xbf16> to vector<160x24xbf16>
    %c3 = arith.constant 3 : index
    %c0_29 = arith.constant 0 : index
    %c0_30 = arith.constant 0 : index
    %24 = vector.load %arg3[%c3, %c0_29, %c0_30] : memref<9x24x128xbf16, #tpu.memory_space<vmem>>, vector<1x24x128xbf16>
    %25 = vector.shape_cast %24 : vector<1x24x128xbf16> to vector<24x128xbf16>
    %cst_31 = arith.constant dense<0.000000e+00> : vector<160x128xf32>
    %26 = tpu.matmul %23, %25, %cst_31 {dimension_numbers = #tpu.dot_dimension_numbers<[1], [0], [0], [1], [0, 0, 1, 1], [], []>} : vector<160x24xbf16>, vector<24x128xbf16>, vector<160x128xf32> -> vector<160x128xf32>
    %c0_32 = arith.constant 0 : index
    %c0_33 = arith.constant 0 : index
    %27 = vector.load %arg7[%c0_32, %c0_33] : memref<160x128xf32, #tpu.memory_space<vmem>>, vector<160x128xf32>
    %28 = arith.addf %27, %26 : vector<160x128xf32>
    %c0_34 = arith.constant 0 : index
    %c0_35 = arith.constant 0 : index
    %29 = vector.load %arg7[%c0_34, %c0_35] : memref<160x128xf32, #tpu.memory_space<vmem>>, vector<160x128xf32>
    tpu.vector_store %arg7[%c0_34, %c0_35], %28 {strides = array<i32>} : memref<160x128xf32, #tpu.memory_space<vmem>>, vector<160x128xf32>,
    %c0_36 = arith.constant 0 : index
    %c17 = arith.constant 17 : index
    %c0_37 = arith.constant 0 : index
    %30 = vector.load %arg2[%c0_36, %c17, %c0_37] : memref<1x208x24xbf16, #tpu.memory_space<vmem>>, vector<1x160x24xbf16>
    %31 = vector.shape_cast %30 : vector<1x160x24xbf16> to vector<160x24xbf16>
    %c4 = arith.constant 4 : index
    %c0_38 = arith.constant 0 : index
    %c0_39 = arith.constant 0 : index
    %32 = vector.load %arg3[%c4, %c0_38, %c0_39] : memref<9x24x128xbf16, #tpu.memory_space<vmem>>, vector<1x24x128xbf16>
    %33 = vector.shape_cast %32 : vector<1x24x128xbf16> to vector<24x128xbf16>
    %cst_40 = arith.constant dense<0.000000e+00> : vector<160x128xf32>
    %34 = tpu.matmul %31, %33, %cst_40 {dimension_numbers = #tpu.dot_dimension_numbers<[1], [0], [0], [1], [0, 0, 1, 1], [], []>} : vector<160x24xbf16>, vector<24x128xbf16>, vector<160x128xf32> -> vector<160x128xf32>
    %c0_41 = arith.constant 0 : index
    %c0_42 = arith.constant 0 : index
    %35 = vector.load %arg7[%c0_41, %c0_42] : memref<160x128xf32, #tpu.memory_space<vmem>>, vector<160x128xf32>
    %36 = arith.addf %35, %34 : vector<160x128xf32>
    %c0_43 = arith.constant 0 : index
    %c0_44 = arith.constant 0 : index
    %37 = vector.load %arg7[%c0_43, %c0_44] : memref<160x128xf32, #tpu.memory_space<vmem>>, vector<160x128xf32>
    tpu.vector_store %arg7[%c0_43, %c0_44], %36 {strides = array<i32>} : memref<160x128xf32, #tpu.memory_space<vmem>>, vector<160x128xf32>,
    %c0_45 = arith.constant 0 : index
    %c18 = arith.constant 18 : index
    %c0_46 = arith.constant 0 : index
    %38 = vector.load %arg2[%c0_45, %c18, %c0_46] : memref<1x208x24xbf16, #tpu.memory_space<vmem>>, vector<1x160x24xbf16>
    %39 = vector.shape_cast %38 : vector<1x160x24xbf16> to vector<160x24xbf16>
    %c5 = arith.constant 5 : index
    %c0_47 = arith.constant 0 : index
    %c0_48 = arith.constant 0 : index
    %40 = vector.load %arg3[%c5, %c0_47, %c0_48] : memref<9x24x128xbf16, #tpu.memory_space<vmem>>, vector<1x24x128xbf16>
    %41 = vector.shape_cast %40 : vector<1x24x128xbf16> to vector<24x128xbf16>
    %cst_49 = arith.constant dense<0.000000e+00> : vector<160x128xf32>
    %42 = tpu.matmul %39, %41, %cst_49 {dimension_numbers = #tpu.dot_dimension_numbers<[1], [0], [0], [1], [0, 0, 1, 1], [], []>} : vector<160x24xbf16>, vector<24x128xbf16>, vector<160x128xf32> -> vector<160x128xf32>
    %c0_50 = arith.constant 0 : index
    %c0_51 = arith.constant 0 : index
    %43 = vector.load %arg7[%c0_50, %c0_51] : memref<160x128xf32, #tpu.memory_space<vmem>>, vector<160x128xf32>
    %44 = arith.addf %43, %42 : vector<160x128xf32>
    %c0_52 = arith.constant 0 : index
    %c0_53 = arith.constant 0 : index
    %45 = vector.load %arg7[%c0_52, %c0_53] : memref<160x128xf32, #tpu.memory_space<vmem>>, vector<160x128xf32>
    tpu.vector_store %arg7[%c0_52, %c0_53], %44 {strides = array<i32>} : memref<160x128xf32, #tpu.memory_space<vmem>>, vector<160x128xf32>,
    %c0_54 = arith.constant 0 : index
    %c32 = arith.constant 32 : index
    %c0_55 = arith.constant 0 : index
    %46 = vector.load %arg2[%c0_54, %c32, %c0_55] : memref<1x208x24xbf16, #tpu.memory_space<vmem>>, vector<1x160x24xbf16>
    %47 = vector.shape_cast %46 : vector<1x160x24xbf16> to vector<160x24xbf16>
    %c6 = arith.constant 6 : index
    %c0_56 = arith.constant 0 : index
    %c0_57 = arith.constant 0 : index
    %48 = vector.load %arg3[%c6, %c0_56, %c0_57] : memref<9x24x128xbf16, #tpu.memory_space<vmem>>, vector<1x24x128xbf16>
    %49 = vector.shape_cast %48 : vector<1x24x128xbf16> to vector<24x128xbf16>
    %cst_58 = arith.constant dense<0.000000e+00> : vector<160x128xf32>
    %50 = tpu.matmul %47, %49, %cst_58 {dimension_numbers = #tpu.dot_dimension_numbers<[1], [0], [0], [1], [0, 0, 1, 1], [], []>} : vector<160x24xbf16>, vector<24x128xbf16>, vector<160x128xf32> -> vector<160x128xf32>
    %c0_59 = arith.constant 0 : index
    %c0_60 = arith.constant 0 : index
    %51 = vector.load %arg7[%c0_59, %c0_60] : memref<160x128xf32, #tpu.memory_space<vmem>>, vector<160x128xf32>
    %52 = arith.addf %51, %50 : vector<160x128xf32>
    %c0_61 = arith.constant 0 : index
    %c0_62 = arith.constant 0 : index
    %53 = vector.load %arg7[%c0_61, %c0_62] : memref<160x128xf32, #tpu.memory_space<vmem>>, vector<160x128xf32>
    tpu.vector_store %arg7[%c0_61, %c0_62], %52 {strides = array<i32>} : memref<160x128xf32, #tpu.memory_space<vmem>>, vector<160x128xf32>,
    %c0_63 = arith.constant 0 : index
    %c33 = arith.constant 33 : index
    %c0_64 = arith.constant 0 : index
    %54 = vector.load %arg2[%c0_63, %c33, %c0_64] : memref<1x208x24xbf16, #tpu.memory_space<vmem>>, vector<1x160x24xbf16>
    %55 = vector.shape_cast %54 : vector<1x160x24xbf16> to vector<160x24xbf16>
    %c7 = arith.constant 7 : index
    %c0_65 = arith.constant 0 : index
    %c0_66 = arith.constant 0 : index
    %56 = vector.load %arg3[%c7, %c0_65, %c0_66] : memref<9x24x128xbf16, #tpu.memory_space<vmem>>, vector<1x24x128xbf16>
    %57 = vector.shape_cast %56 : vector<1x24x128xbf16> to vector<24x128xbf16>
    %cst_67 = arith.constant dense<0.000000e+00> : vector<160x128xf32>
    %58 = tpu.matmul %55, %57, %cst_67 {dimension_numbers = #tpu.dot_dimension_numbers<[1], [0], [0], [1], [0, 0, 1, 1], [], []>} : vector<160x24xbf16>, vector<24x128xbf16>, vector<160x128xf32> -> vector<160x128xf32>
    %c0_68 = arith.constant 0 : index
    %c0_69 = arith.constant 0 : index
    %59 = vector.load %arg7[%c0_68, %c0_69] : memref<160x128xf32, #tpu.memory_space<vmem>>, vector<160x128xf32>
    %60 = arith.addf %59, %58 : vector<160x128xf32>
    %c0_70 = arith.constant 0 : index
    %c0_71 = arith.constant 0 : index
    %61 = vector.load %arg7[%c0_70, %c0_71] : memref<160x128xf32, #tpu.memory_space<vmem>>, vector<160x128xf32>
    tpu.vector_store %arg7[%c0_70, %c0_71], %60 {strides = array<i32>} : memref<160x128xf32, #tpu.memory_space<vmem>>, vector<160x128xf32>,
    %c0_72 = arith.constant 0 : index
    %c34 = arith.constant 34 : index
    %c0_73 = arith.constant 0 : index
    %62 = vector.load %arg2[%c0_72, %c34, %c0_73] : memref<1x208x24xbf16, #tpu.memory_space<vmem>>, vector<1x160x24xbf16>
    %63 = vector.shape_cast %62 : vector<1x160x24xbf16> to vector<160x24xbf16>
    %c8 = arith.constant 8 : index
    %c0_74 = arith.constant 0 : index
    %c0_75 = arith.constant 0 : index
    %64 = vector.load %arg3[%c8, %c0_74, %c0_75] : memref<9x24x128xbf16, #tpu.memory_space<vmem>>, vector<1x24x128xbf16>
    %65 = vector.shape_cast %64 : vector<1x24x128xbf16> to vector<24x128xbf16>
    %cst_76 = arith.constant dense<0.000000e+00> : vector<160x128xf32>
    %66 = tpu.matmul %63, %65, %cst_76 {dimension_numbers = #tpu.dot_dimension_numbers<[1], [0], [0], [1], [0, 0, 1, 1], [], []>} : vector<160x24xbf16>, vector<24x128xbf16>, vector<160x128xf32> -> vector<160x128xf32>
    %c0_77 = arith.constant 0 : index
    %c0_78 = arith.constant 0 : index
    %67 = vector.load %arg7[%c0_77, %c0_78] : memref<160x128xf32, #tpu.memory_space<vmem>>, vector<160x128xf32>
    %68 = arith.addf %67, %66 : vector<160x128xf32>
    %c0_79 = arith.constant 0 : index
    %c0_80 = arith.constant 0 : index
    %69 = vector.load %arg7[%c0_79, %c0_80] : memref<160x128xf32, #tpu.memory_space<vmem>>, vector<160x128xf32>
    tpu.vector_store %arg7[%c0_79, %c0_80], %68 {strides = array<i32>} : memref<160x128xf32, #tpu.memory_space<vmem>>, vector<160x128xf32>,
    %c0_81 = arith.constant 0 : index
    %c0_82 = arith.constant 0 : index
    %70 = vector.load %arg7[%c0_81, %c0_82] : memref<160x128xf32, #tpu.memory_space<vmem>>, vector<160x128xf32>
    %c0_83 = arith.constant 0 : index
    %c0_84 = arith.constant 0 : index
    %71 = vector.load %arg4[%c0_83, %c0_84] : memref<1x128xf32, #tpu.memory_space<vmem>>, vector<1x128xf32>
    %72 = vector.broadcast %71 : vector<1x128xf32> to vector<160x128xf32>
    %73 = arith.mulf %70, %72 : vector<160x128xf32>
    %c0_85 = arith.constant 0 : index
    %c0_86 = arith.constant 0 : index
    %74 = vector.load %arg5[%c0_85, %c0_86] : memref<1x128xf32, #tpu.memory_space<vmem>>, vector<1x128xf32>
    %75 = vector.broadcast %74 : vector<1x128xf32> to vector<160x128xf32>
    %76 = arith.addf %73, %75 : vector<160x128xf32>
    %cst_87 = arith.constant 0.000000e+00 : f32
    %77 = vector.broadcast %cst_87 : f32 to vector<160x128xf32>
    %78 = arith.maximumf %76, %77 : vector<160x128xf32>
    %79 = arith.truncf %78 : vector<160x128xf32> to vector<160x128xbf16>
    %c0_88 = arith.constant 0 : index
    %c0_89 = arith.constant 0 : index
    %c0_90 = arith.constant 0 : index
    %80 = vector.load %arg6[%c0_88, %c0_89, %c0_90] : memref<1x160x128xbf16, #tpu.memory_space<vmem>>, vector<1x160x128xbf16>
    %81 = vector.shape_cast %80 : vector<1x160x128xbf16> to vector<160x128xbf16>
    %82 = vector.shape_cast %79 : vector<160x128xbf16> to vector<1x160x128xbf16>
    tpu.vector_store %arg6[%c0_88, %c0_89, %c0_90], %82 {strides = array<i32>} : memref<1x160x128xbf16, #tpu.memory_space<vmem>>, vector<1x160x128xbf16>,
    return
  }
  func.func @transform_0(%arg0: i32, %arg1: i32) -> (i32, i32, i32) {
    %c0_i32 = arith.constant 0 : i32
    %c0_i32_0 = arith.constant 0 : i32
    %c0_i32_1 = arith.constant 0 : i32
    return %arg0, %c0_i32, %c0_i32_0 : i32, i32, i32
  }
  func.func @transform_1(%arg0: i32, %arg1: i32) -> (i32, i32, i32) {
    %c0_i32 = arith.constant 0 : i32
    %c0_i32_0 = arith.constant 0 : i32
    %c0_i32_1 = arith.constant 0 : i32
    return %c0_i32, %c0_i32_0, %arg1 : i32, i32, i32
  }
  func.func @transform_2(%arg0: i32, %arg1: i32) -> (i32, i32) {
    %c0_i32 = arith.constant 0 : i32
    %c0_i32_0 = arith.constant 0 : i32
    return %c0_i32, %arg1 : i32, i32
  }
  func.func @transform_3(%arg0: i32, %arg1: i32) -> (i32, i32) {
    %c0_i32 = arith.constant 0 : i32
    %c0_i32_0 = arith.constant 0 : i32
    return %c0_i32, %arg1 : i32, i32
  }
  func.func @transform_4(%arg0: i32, %arg1: i32) -> (i32, i32, i32) {
    %c0_i32 = arith.constant 0 : i32
    %c0_i32_0 = arith.constant 0 : i32
    return %arg0, %c0_i32, %arg1 : i32, i32, i32
  }
}

</mosaic_0001>

<llo_original>
// kernel: tpu_custom_call.1
$region0: #{tpu_custom_call.1}
  #allocation0 [shape = 'u32[]', space=smem, size = 0x4, offset = 0x4, fixed_abs, tag = 'smem constant byte address 0x4 - core index']
  #allocation1 [shape = 'u32[72,128]{1,0:T(1,128)}', space=vmem, size = 0x9000, scoped, tag = 'internal scratch']
  #allocation2 [shape = 'f32[160,128]{1,0:T(8,128)}', space=vmem, size = 0x14000, scoped, tag = 'scratch operand']
  %s0 = inlined_call_operand.vmem [shape: bf16[2,208,24], index: 0, kind: input, shape index: {}]
  %s1 = inlined_call_operand.vmem [shape: bf16[9,24,128], index: 1, kind: input, shape index: {}]
  %s2 = inlined_call_operand.vmem [shape: f32[1,128], index: 2, kind: input, shape index: {}]
  %s3 = inlined_call_operand.vmem [shape: f32[1,128], index: 3, kind: input, shape index: {}]
  %s4 = inlined_call_operand.hbm [shape: bf16[2,160,128], index: 4, kind: output, shape index: {}]
  %s5 = sld [smem:[#allocation0]]
  $region49: #{tpu_custom_call.1} parent=0
    _
  %s7 = ssub.s32 1, %s5
  %s8 = scalar_select 0, %s7, %s5
  $region1: #{tpu_custom_call.1} parent=0
    #allocation3 [shape = 'u8[81920]{0}', space=vmem, size = 0x14000, scoped, tag = 'output window, operand 0']
    #allocation4 [shape = 's32[2]{0}', space=sflag, size = 0x8, scoped, tag = 'scoped memory for tpu_custom_call.1']
    %9 = vsyncpa [#allocation4], 0
    %s10 = scalar_lea.sflag [#allocation4], 1
    %11 = vsyncpa %s10, 0
    loop: start=0, step=1, limit=4
    $region2: #{tpu_custom_call.1} parent=1 // loop_pre_header
      _
    $region3: #{tpu_custom_call.1} parent=1 // loop_header
      %s13 = sphi 0, %s17
      %p14 = scmp.ge.s32.totalorder %s13, 4
      %s20 = sphi 0, %s32
      %s21 = sphi 0, %s28
      %s22 = sphi 0, %s20
      %s23 = sphi 0, %s21
      %s24 = sphi 0, %s22
      %s25 = sphi 0, %s23
      %s35 = sphi 0, %s37
      %s38 = sphi 0, %s35
      %s39 = sphi 0, %s38
      %s55 = sphi 0, %s39
      %s61 = sphi 0, %s63
      %s64 = sphi 0, %s61
      %s65 = sphi 0, %s64
      %s81 = sphi 0, %s65
      %s87 = sphi 0, %s89
      %s90 = sphi 0, %s87
      %s91 = sphi 0, %s90
      %s107 = sphi 0, %s91
      %s113 = sphi 0, %s115
      %s116 = sphi 0, %s113
      %s117 = sphi 0, %s116
      %s133 = sphi 0, %s117
      %s141 = sphi 0, %s143
      %s144 = sphi 0, %s141
      %s145 = sphi 0, %s144
      %s161 = sphi 0, %s145
    $region4: #{tpu_custom_call.1} parent=1 // loop_header_branch
      %16 = sbr.rel (%p14) target = $region8
    $region5: #{tpu_custom_call.1} parent=1 // loop_body
      %s18 = ssub.s32 %s13, 1
      %s19 = ssub.s32 %s13, 2
      %s26 = sadd.s32 1, %s21
      %p27 = scmp.ge.s32.totalorder %s26, 1
      %s28 = scalar_select %p27, 0, %s26
      %s29 = sadd.s32 1, %s20
      %s30 = scalar_select %p27, %s29, %s20
      %p31 = scmp.ge.s32.totalorder %s30, 2
      %s32 = scalar_select %p31, 0, %s30
      %s33 = ssub.s32 %s20, %s32
      %p34 = scmp.eq.s32.totalorder %s33, 0
      %s36 = sadd.s32 %s35, 1
      %s37 = scalar_select %p34, %s35, %s36
      %p40 = pneg %p34
      %p41 = scmp.eq.s32.totalorder %s13, 1
      %p42 = por %p40, %p41
      %p43 = scmp.ne.s32.totalorder %s35, %s38
      %p44 = scmp.eq.s32.totalorder %s13, 0
      %p45 = por %p43, %p44
      %p46 = scmp.ne.s32.totalorder %s35, %s38
      %p47 = scmp.eq.s32.totalorder %s18, 1
      %p48 = por %p46, %p47
      %p49 = scmp.ne.s32.totalorder %s38, %s39
      %p50 = scmp.eq.s32.totalorder %s18, 0
      %p51 = por %p49, %p50
      %p52 = scmp.ne.s32.totalorder %s38, %s39
      %p53 = scmp.eq.s32.totalorder %s19, 1
      %p54 = por %p52, %p53
      %p56 = scmp.ne.s32.totalorder %s39, %s55
      %p57 = scmp.eq.s32.totalorder %s19, 0
      %p58 = por %p56, %p57
      %s59 = ssub.s32 %s21, %s28
      %p60 = scmp.eq.s32.totalorder %s59, 0
      %s62 = sadd.s32 %s61, 1
      %s63 = scalar_select %p60, %s61, %s62
      %p66 = pneg %p60
      %p67 = scmp.eq.s32.totalorder %s13, 1
      %p68 = por %p66, %p67
      %p69 = scmp.ne.s32.totalorder %s61, %s64
      %p70 = scmp.eq.s32.totalorder %s13, 0
      %p71 = por %p69, %p70
      %p72 = scmp.ne.s32.totalorder %s61, %s64
      %p73 = scmp.eq.s32.totalorder %s18, 1
      %p74 = por %p72, %p73
      %p75 = scmp.ne.s32.totalorder %s64, %s65
      %p76 = scmp.eq.s32.totalorder %s18, 0
      %p77 = por %p75, %p76
      %p78 = scmp.ne.s32.totalorder %s64, %s65
      %p79 = scmp.eq.s32.totalorder %s19, 1
      %p80 = por %p78, %p79
      %p82 = scmp.ne.s32.totalorder %s65, %s81
      %p83 = scmp.eq.s32.totalorder %s19, 0
      %p84 = por %p82, %p83
      %s85 = ssub.s32 %s21, %s28
      %p86 = scmp.eq.s32.totalorder %s85, 0
      %s88 = sadd.s32 %s87, 1
      %s89 = scalar_select %p86, %s87, %s88
      %p92 = pneg %p86
      %p93 = scmp.eq.s32.totalorder %s13, 1
      %p94 = por %p92, %p93
      %p95 = scmp.ne.s32.totalorder %s87, %s90
      %p96 = scmp.eq.s32.totalorder %s13, 0
      %p97 = por %p95, %p96
      %p98 = scmp.ne.s32.totalorder %s87, %s90
      %p99 = scmp.eq.s32.totalorder %s18, 1
      %p100 = por %p98, %p99
      %p101 = scmp.ne.s32.totalorder %s90, %s91
      %p102 = scmp.eq.s32.totalorder %s18, 0
      %p103 = por %p101, %p102
      %p104 = scmp.ne.s32.totalorder %s90, %s91
      %p105 = scmp.eq.s32.totalorder %s19, 1
      %p106 = por %p104, %p105
      %p108 = scmp.ne.s32.totalorder %s91, %s107
      %p109 = scmp.eq.s32.totalorder %s19, 0
      %p110 = por %p108, %p109
      %s111 = ssub.s32 %s21, %s28
      %p112 = scmp.eq.s32.totalorder %s111, 0
      %s114 = sadd.s32 %s113, 1
      %s115 = scalar_select %p112, %s113, %s114
      %p118 = pneg %p112
      %p119 = scmp.eq.s32.totalorder %s13, 1
      %p120 = por %p118, %p119
      %p121 = scmp.ne.s32.totalorder %s113, %s116
      %p122 = scmp.eq.s32.totalorder %s13, 0
      %p123 = por %p121, %p122
      %p124 = scmp.ne.s32.totalorder %s113, %s116
      %p125 = scmp.eq.s32.totalorder %s18, 1
      %p126 = por %p124, %p125
      %p127 = scmp.ne.s32.totalorder %s116, %s117
      %p128 = scmp.eq.s32.totalorder %s18, 0
      %p129 = por %p127, %p128
      %p130 = scmp.ne.s32.totalorder %s116, %s117
      %p131 = scmp.eq.s32.totalorder %s19, 1
      %p132 = por %p130, %p131
      %p134 = scmp.ne.s32.totalorder %s117, %s133
      %p135 = scmp.eq.s32.totalorder %s19, 0
      %p136 = por %p134, %p135
      %s137 = ssub.s32 %s20, %s32
      %s138 = ssub.s32 %s21, %s28
      %s139 = sor.u32 %s137, %s138
      %p140 = scmp.eq.s32.totalorder %s139, 0
      %s142 = sadd.s32 %s141, 1
      %s143 = scalar_select %p140, %s141, %s142
      %p146 = pneg %p140
      %p147 = scmp.eq.s32.totalorder %s13, 1
      %p148 = por %p146, %p147
      %p149 = scmp.ne.s32.totalorder %s141, %s144
      %p150 = scmp.eq.s32.totalorder %s13, 0
      %p151 = por %p149, %p150
      %p152 = scmp.ne.s32.totalorder %s141, %s144
      %p153 = scmp.eq.s32.totalorder %s18, 1
      %p154 = por %p152, %p153
      %p155 = scmp.ne.s32.totalorder %s144, %s145
      %p156 = scmp.eq.s32.totalorder %s18, 0
      %p157 = por %p155, %p156
      %p158 = scmp.ne.s32.totalorder %s144, %s145
      %p159 = scmp.eq.s32.totalorder %s19, 1
      %p160 = por %p158, %p159
      %p162 = scmp.ne.s32.totalorder %s145, %s161
      %p163 = scmp.eq.s32.totalorder %s19, 0
      %p164 = por %p162, %p163
      %p165 = scmp.le.s32.totalorder 1, %s13
      %p166 = scmp.lt.s32.totalorder %s13, 3
      %p167 = pnand %p165, %p166
      %p168 = pneg %p167
      // Predicated region
      $region9: #{tpu_custom_call.1} parent=5 // pred_check
        _
      $region10: #{tpu_custom_call.1} parent=5 // pred_check_branch
        %170 = sbr.rel (%p167) target = $region12
      $region11: #{tpu_custom_call.1} parent=5 // pred_region
        %s171 = ssub.s32 %s13, 1
        // Predicated region
        $region13: #{tpu_custom_call.1} parent=11 // pred_check
          %p172 = pneg %p77
        $region14: #{tpu_custom_call.1} parent=11 // pred_check_branch
          %174 = sbr.rel (%p172) target = $region16
        $region15: #{tpu_custom_call.1} parent=11 // pred_region
          %p175 = scmp.lt.s32.totalorder %s23, 0
          %s176 = scalar_select %p175, %s23, 0
          %s177 = smul.addr %s176, 4
          %s178 = scalar_lea.vmem %s1, %s177
        $region16: #{tpu_custom_call.1} parent=11 // pred_fallthru
          _
        // Predicated region
        $region17: #{tpu_custom_call.1} parent=11 // pred_check
          %p179 = pneg %p103
        $region18: #{tpu_custom_call.1} parent=11 // pred_check_branch
          %181 = sbr.rel (%p179) target = $region20
        $region19: #{tpu_custom_call.1} parent=11 // pred_region
          %p182 = scmp.lt.s32.totalorder %s23, 0
          %s183 = scalar_select %p182, %s23, 0
          %s184 = scalar_lea.vmem %s2, %s183
        $region20: #{tpu_custom_call.1} parent=11 // pred_fallthru
          _
        // Predicated region
        $region21: #{tpu_custom_call.1} parent=11 // pred_check
          %p185 = pneg %p129
        $region22: #{tpu_custom_call.1} parent=11 // pred_check_branch
          %187 = sbr.rel (%p185) target = $region24
        $region23: #{tpu_custom_call.1} parent=11 // pred_region
          %p188 = scmp.lt.s32.totalorder %s23, 0
          %s189 = scalar_select %p188, %s23, 0
          %s190 = scalar_lea.vmem %s3, %s189
        $region24: #{tpu_custom_call.1} parent=11 // pred_fallthru
          _
      $region12: #{tpu_custom_call.1} parent=5 // pred_fallthru
        _
      %p191 = scmp.lt.s32.totalorder %s13, 2
      // Predicated region
      $region25: #{tpu_custom_call.1} parent=5 // pred_check
        %p192 = pneg %p191
      $region26: #{tpu_custom_call.1} parent=5 // pred_check_branch
        %194 = sbr.rel (%p192) target = $region28
      $region27: #{tpu_custom_call.1} parent=5 // pred_region
        // Predicated region
        $region29: #{tpu_custom_call.1} parent=27 // pred_check
          %p195 = pneg %p45
        $region30: #{tpu_custom_call.1} parent=27 // pred_check_branch
          %197 = sbr.rel (%p195) target = $region32
        $region31: #{tpu_custom_call.1} parent=27 // pred_region
          %p198 = scmp.lt.s32.totalorder %s20, 1
          %s199 = scalar_select %p198, %s20, 1
          %s200 = smul.addr %s199, 26
          %s201 = smul.addr %s200, 4
          %s202 = scalar_lea.vmem %s0, %s201
        $region32: #{tpu_custom_call.1} parent=27 // pred_fallthru
          _
      $region28: #{tpu_custom_call.1} parent=5 // pred_fallthru
        _
      %p203 = scmp.le.s32.totalorder 1, %s13
      %p204 = scmp.lt.s32.totalorder %s13, 3
      %p205 = pnand %p203, %p204
      %p206 = pneg %p205
      // Predicated region
      $region33: #{tpu_custom_call.1} parent=5 // pred_check
        _
      $region34: #{tpu_custom_call.1} parent=5 // pred_check_branch
        %208 = sbr.rel (%p205) target = $region36
      $region35: #{tpu_custom_call.1} parent=5 // pred_region
        %s209 = ssub.s32 %s13, 1
        %p210 = scmp.lt.s32.totalorder %s22, 1
        %s211 = scalar_select %p210, %s22, 1
        %s212 = smul.addr %s211, 26
        %s213 = smul.addr %s212, 4
        %s214 = scalar_lea.vmem %s0, %s213
        %p215 = pneg %p51
        %p216 = pneg %p48
        %p217 = scmp.lt.s32.totalorder %s23, 0
        %s218 = scalar_select %p217, %s23, 0
        %s219 = smul.addr %s218, 4
        %s220 = scalar_lea.vmem %s1, %s219
        %p221 = pneg %p77
        %p222 = pneg %p74
        %p223 = scmp.lt.s32.totalorder %s23, 0
        %s224 = scalar_select %p223, %s23, 0
        %s225 = scalar_lea.vmem %s2, %s224
        %p226 = pneg %p103
        %p227 = pneg %p100
        %p228 = scmp.lt.s32.totalorder %s23, 0
        %s229 = scalar_select %p228, %s23, 0
        %s230 = scalar_lea.vmem %s3, %s229
        %p231 = pneg %p129
        %p232 = pneg %p126
        %p233 = pneg %p157
        %p234 = pneg %p154
        %s235 = sand.u32 %s144, 1
        %s236 = scalar_lea.sflag [#allocation4], %s235
        %s237 = sand.u32 %s144, 1
        %s238 = smul.addr %s237, 80
        %s239 = scalar_lea.vmem [#allocation3], %s238
        %p240 = scmp.lt.s32.totalorder %s22, 1
        %s241 = scalar_select %p240, %s22, 1
        %s242 = smul.addr %s241, 26
        %s243 = smul.addr %s242, 4
        %s244 = scalar_lea.vmem %s0, %s243
        %p245 = scmp.lt.s32.totalorder %s23, 0
        %s246 = scalar_select %p245, %s23, 0
        %s247 = smul.addr %s246, 4
        %s248 = scalar_lea.vmem %s1, %s247
        %p249 = scmp.lt.s32.totalorder %s23, 0
        %s250 = scalar_select %p249, %s23, 0
        %s251 = scalar_lea.vmem %s2, %s250
        %p252 = scmp.lt.s32.totalorder %s23, 0
        %s253 = scalar_select %p252, %s23, 0
        %s254 = scalar_lea.vmem %s3, %s253
        %v256 = vld [vmem:[%s244] sm:$0xf]
        %v257 = vld [vmem:[%s244 + $0x4] sm:$0xf]
        %v258 = vld [vmem:[%s244 + $0x8] sm:$0xf]
        %v259 = vld [vmem:[%s244 + $0xc] sm:$0xf]
        %v260 = vld [vmem:[%s244 + $0x10] sm:$0xf]
        %v261 = vld [vmem:[%s244 + $0x14] sm:$0xf]
        %v262 = vld [vmem:[%s244 + $0x18] sm:$0xf]
        %v263 = vld [vmem:[%s244 + $0x1c] sm:$0xf]
        %v264 = vld [vmem:[%s244 + $0x20] sm:$0xf]
        %v265 = vld [vmem:[%s244 + $0x24] sm:$0xf]
        %v266 = vld [vmem:[%s244 + $0x28] sm:$0xf]
        %v267 = vld [vmem:[%s244 + $0x2c] sm:$0xf]
        %v268 = vld [vmem:[%s244 + $0x30] sm:$0xf]
        %v269 = vld [vmem:[%s244 + $0x34] sm:$0xf]
        %v270 = vld [vmem:[%s244 + $0x38] sm:$0xf]
        %v271 = vld [vmem:[%s244 + $0x3c] sm:$0xf]
        %v272 = vld [vmem:[%s244 + $0x40] sm:$0xf]
        %v273 = vld [vmem:[%s244 + $0x44] sm:$0xf]
        %v274 = vld [vmem:[%s244 + $0x48] sm:$0xf]
        %v275 = vld [vmem:[%s244 + $0x4c] sm:$0xf]
        %v276 = vld [vmem:[%s248] sm:$0xf]
        %v277 = vld [vmem:[%s248 + $0x4] sm:$0xf]
        %v278 = vld [vmem:[%s248 + $0x8] sm:$0xf]
        %v299 = vunpack.c.l.b16 %v256
        %v300 = vunpack.c.l.b16 %v257
        %v301 = vunpack.c.l.b16 %v258
        %v302 = vunpack.c.l.b16 %v259
        %v303 = vunpack.c.l.b16 %v260
        %v304 = vunpack.c.l.b16 %v261
        %v305 = vunpack.c.l.b16 %v262
        %v306 = vunpack.c.l.b16 %v263
        %v307 = vunpack.c.l.b16 %v264
        %v308 = vunpack.c.l.b16 %v265
        %v309 = vunpack.c.l.b16 %v266
        %v310 = vunpack.c.l.b16 %v267
        %v311 = vunpack.c.l.b16 %v268
        %v312 = vunpack.c.l.b16 %v269
        %v313 = vunpack.c.l.b16 %v270
        %v314 = vunpack.c.l.b16 %v271
        %v315 = vunpack.c.l.b16 %v272
        %v316 = vunpack.c.l.b16 %v273
        %v317 = vunpack.c.l.b16 %v274
        %v318 = vunpack.c.l.b16 %v275
        %v319 = vpack.c.b16 %v300, %v299
        %v320 = vpack.c.b16 %v302, %v301
        %v321 = vpack.c.b16 %v304, %v303
        %v322 = vpack.c.b16 %v306, %v305
        %v323 = vpack.c.b16 %v308, %v307
        %v324 = vpack.c.b16 %v310, %v309
        %v325 = vpack.c.b16 %v312, %v311
        %v326 = vpack.c.b16 %v314, %v313
        %v327 = vpack.c.b16 %v316, %v315
        %v328 = vpack.c.b16 %v318, %v317
        %v332 = vunpack.c.l.b16 %v276
        %v333 = vunpack.c.l.b16 %v277
        %v334 = vunpack.c.l.b16 %v278
        %v335 = vpack.c.b16 %v333, %v332
        %v336 = vpack.c.b16 %v334, %v334
        %vm338 = vcmask 195584
        %v340 = vsel %vm338, %v319, 0
        %v343 = vsel %vm338, %v320, 0
        %v346 = vsel %vm338, %v321, 0
        %v349 = vsel %vm338, %v322, 0
        %v352 = vsel %vm338, %v323, 0
        %v355 = vsel %vm338, %v324, 0
        %v358 = vsel %vm338, %v325, 0
        %v361 = vsel %vm338, %v326, 0
        %v364 = vsel %vm338, %v327, 0
        %v367 = vsel %vm338, %v328, 0
        %vm369 = vcmask 1043456
        %v371 = vsel %vm369, %v336, 0
        %373 = vmatpush.bf16.msra.mxu0 0
        %374 = vmatpush.bf16.msra.mxu0 0
        %375 = vmatpush.bf16.msra.mxu0 0
        %376 = vmatpush.bf16.msra.mxu0 0
        %377 = vmatpush.bf16.msra.mxu0 0
        %378 = vmatpush.bf16.msra.mxu0 0
        %379 = vmatpush.bf16.msra.mxu0 %v371
        %380 = vmatpush.bf16.msra.mxu0 %v335
        %381 = vmatmul.bf16.gmra.mxu0 %v340
        %v382 = vpop.f32.mrf.mxu0
        %v383 = vadd.f32 0.0, %v382
        %v384 = vpop.f32.mrf.mxu0
        %v385 = vadd.f32 0.0, %v384
        %386 = vmatmul.bf16.gmra.mxu0 %v343
        %v387 = vpop.f32.mrf.mxu0
        %v388 = vadd.f32 0.0, %v387
        %v389 = vpop.f32.mrf.mxu0
        %v390 = vadd.f32 0.0, %v389
        %391 = vmatmul.bf16.gmra.mxu0 %v346
        %v392 = vpop.f32.mrf.mxu0
        %v393 = vadd.f32 0.0, %v392
        %v394 = vpop.f32.mrf.mxu0
        %v395 = vadd.f32 0.0, %v394
        %396 = vmatmul.bf16.gmra.mxu0 %v349
        %v397 = vpop.f32.mrf.mxu0
        %v398 = vadd.f32 0.0, %v397
        %v399 = vpop.f32.mrf.mxu0
        %v400 = vadd.f32 0.0, %v399
        %401 = vmatmul.bf16.gmra.mxu0 %v352
        %v402 = vpop.f32.mrf.mxu0
        %v403 = vadd.f32 0.0, %v402
        %v404 = vpop.f32.mrf.mxu0
        %v405 = vadd.f32 0.0, %v404
        %406 = vmatmul.bf16.gmra.mxu0 %v355
        %v407 = vpop.f32.mrf.mxu0
        %v408 = vadd.f32 0.0, %v407
        %v409 = vpop.f32.mrf.mxu0
        %v410 = vadd.f32 0.0, %v409
        %411 = vmatmul.bf16.gmra.mxu0 %v358
        %v412 = vpop.f32.mrf.mxu0
        %v413 = vadd.f32 0.0, %v412
        %v414 = vpop.f32.mrf.mxu0
        %v415 = vadd.f32 0.0, %v414
        %416 = vmatmul.bf16.gmra.mxu0 %v361
        %v417 = vpop.f32.mrf.mxu0
        %v418 = vadd.f32 0.0, %v417
        %v419 = vpop.f32.mrf.mxu0
        %v420 = vadd.f32 0.0, %v419
        %421 = vmatmul.bf16.gmra.mxu0 %v364
        %v422 = vpop.f32.mrf.mxu0
        %v423 = vadd.f32 0.0, %v422
        %v424 = vpop.f32.mrf.mxu0
        %v425 = vadd.f32 0.0, %v424
        %426 = vmatmul.bf16.gmra.mxu0 %v367
        %v427 = vpop.f32.mrf.mxu0
        %v428 = vadd.f32 0.0, %v427
        %v429 = vpop.f32.mrf.mxu0
        %v430 = vadd.f32 0.0, %v429
        %431 = vdwg.mxu0
        %432 = vst [vmem:[#allocation2] sm:$0xff] %v383
        %433 = vst [vmem:[#allocation2 + $0x8] sm:$0xff] %v385
        %434 = vst [vmem:[#allocation2 + $0x10] sm:$0xff] %v388
        %435 = vst [vmem:[#allocation2 + $0x18] sm:$0xff] %v390
        %436 = vst [vmem:[#allocation2 + $0x20] sm:$0xff] %v393
        %437 = vst [vmem:[#allocation2 + $0x28] sm:$0xff] %v395
        %438 = vst [vmem:[#allocation2 + $0x30] sm:$0xff] %v398
        %439 = vst [vmem:[#allocation2 + $0x38] sm:$0xff] %v400
        %440 = vst [vmem:[#allocation2 + $0x40] sm:$0xff] %v403
        %441 = vst [vmem:[#allocation2 + $0x48] sm:$0xff] %v405
        %442 = vst [vmem:[#allocation2 + $0x50] sm:$0xff] %v408
        %443 = vst [vmem:[#allocation2 + $0x58] sm:$0xff] %v410
        %444 = vst [vmem:[#allocation2 + $0x60] sm:$0xff] %v413
        %445 = vst [vmem:[#allocation2 + $0x68] sm:$0xff] %v415
        %446 = vst [vmem:[#allocation2 + $0x70] sm:$0xff] %v418
        %447 = vst [vmem:[#allocation2 + $0x78] sm:$0xff] %v420
        %448 = vst [vmem:[#allocation2 + $0x80] sm:$0xff] %v423
        %449 = vst [vmem:[#allocation2 + $0x88] sm:$0xff] %v425
        %450 = vst [vmem:[#allocation2 + $0x90] sm:$0xff] %v428
        %451 = vst [vmem:[#allocation2 + $0x98] sm:$0xff] %v430
        %v452 = vld [vmem:[%s244] sm:$0xf]
        %v453 = vld [vmem:[%s244 + $0x4] sm:$0xf]
        %v454 = vld [vmem:[%s244 + $0x8] sm:$0xf]
        %v455 = vld [vmem:[%s244 + $0xc] sm:$0xf]
        %v456 = vld [vmem:[%s244 + $0x10] sm:$0xf]
        %v457 = vld [vmem:[%s244 + $0x14] sm:$0xf]
        %v458 = vld [vmem:[%s244 + $0x18] sm:$0xf]
        %v459 = vld [vmem:[%s244 + $0x1c] sm:$0xf]
        %v460 = vld [vmem:[%s244 + $0x20] sm:$0xf]
        %v461 = vld [vmem:[%s244 + $0x24] sm:$0xf]
        %v462 = vld [vmem:[%s244 + $0x28] sm:$0xf]
        %v463 = vld [vmem:[%s244 + $0x2c] sm:$0xf]
        %v464 = vld [vmem:[%s244 + $0x30] sm:$0xf]
        %v465 = vld [vmem:[%s244 + $0x34] sm:$0xf]
        %v466 = vld [vmem:[%s244 + $0x38] sm:$0xf]
        %v467 = vld [vmem:[%s244 + $0x3c] sm:$0xf]
        %v468 = vld [vmem:[%s244 + $0x40] sm:$0xf]
        %v469 = vld [vmem:[%s244 + $0x44] sm:$0xf]
        %v470 = vld [vmem:[%s244 + $0x48] sm:$0xf]
        %v471 = vld [vmem:[%s244 + $0x4c] sm:$0xf]
        %v472 = vld [vmem:[%s244 + $0x50] sm:$0x1]
        %s473 = scalar_lea.vmem %s248, 12
        %v474 = vld [vmem:[%s473] sm:$0xf]
        %v475 = vld [vmem:[%s473 + $0x4] sm:$0xf]
        %v476 = vld [vmem:[%s473 + $0x8] sm:$0xf]
        %v498 = vunpack.c.l.b16 %v452
        %v499 = vunpack.c.l.b16 %v453
        %v500 = vunpack.c.l.b16 %v454
        %v501 = vunpack.c.l.b16 %v455
        %v502 = vunpack.c.l.b16 %v456
        %v503 = vunpack.c.l.b16 %v457
        %v504 = vunpack.c.l.b16 %v458
        %v505 = vunpack.c.l.b16 %v459
        %v506 = vunpack.c.l.b16 %v460
        %v507 = vunpack.c.l.b16 %v461
        %v508 = vunpack.c.l.b16 %v462
        %v509 = vunpack.c.l.b16 %v463
        %v510 = vunpack.c.l.b16 %v464
        %v511 = vunpack.c.l.b16 %v465
        %v512 = vunpack.c.l.b16 %v466
        %v513 = vunpack.c.l.b16 %v467
        %v514 = vunpack.c.l.b16 %v468
        %v515 = vunpack.c.l.b16 %v469
        %v516 = vunpack.c.l.b16 %v470
        %v517 = vunpack.c.l.b16 %v471
        %v518 = vunpack.c.l.b16 %v472
        %v519 = vpack.c.b16 %v499, %v498
        %v520 = vpack.c.b16 %v501, %v500
        %v521 = vpack.c.b16 %v503, %v502
        %v522 = vpack.c.b16 %v505, %v504
        %v523 = vpack.c.b16 %v507, %v506
        %v524 = vpack.c.b16 %v509, %v508
        %v525 = vpack.c.b16 %v511, %v510
        %v526 = vpack.c.b16 %v513, %v512
        %v527 = vpack.c.b16 %v515, %v514
        %v528 = vpack.c.b16 %v517, %v516
        %v529 = vpack.c.b16 %v518, %v518
        %vm530 = vsmask.f32 7424
        %v532 = vshrl.u32 %v519, 16
        %v534 = vshll.u32 %v519, 16
        %v536 = vrot.slane %v534, 1
        %v537 = vor.u32 %v532, %v536
        %v539 = vshll.u32 %v520, 16
        %v541 = vrot.slane %v539, 1
        %v542 = vsel %vm530, %v537, %v541
        %v543 = vshrl.u32 %v520, 16
        %v545 = vor.u32 %v543, %v541
        %v547 = vshll.u32 %v521, 16
        %v549 = vrot.slane %v547, 1
        %v550 = vsel %vm530, %v545, %v549
        %v551 = vshrl.u32 %v521, 16
        %v553 = vor.u32 %v551, %v549
        %v555 = vshll.u32 %v522, 16
        %v557 = vrot.slane %v555, 1
        %v558 = vsel %vm530, %v553, %v557
        %v559 = vshrl.u32 %v522, 16
        %v561 = vor.u32 %v559, %v557
        %v563 = vshll.u32 %v523, 16
        %v565 = vrot.slane %v563, 1
        %v566 = vsel %vm530, %v561, %v565
        %v567 = vshrl.u32 %v523, 16
        %v569 = vor.u32 %v567, %v565
        %v571 = vshll.u32 %v524, 16
        %v573 = vrot.slane %v571, 1
        %v574 = vsel %vm530, %v569, %v573
        %v575 = vshrl.u32 %v524, 16
        %v577 = vor.u32 %v575, %v573
        %v579 = vshll.u32 %v525, 16
        %v581 = vrot.slane %v579, 1
        %v582 = vsel %vm530, %v577, %v581
        %v583 = vshrl.u32 %v525, 16
        %v585 = vor.u32 %v583, %v581
        %v587 = vshll.u32 %v526, 16
        %v589 = vrot.slane %v587, 1
        %v590 = vsel %vm530, %v585, %v589
        %v591 = vshrl.u32 %v526, 16
        %v593 = vor.u32 %v591, %v589
        %v595 = vshll.u32 %v527, 16
        %v597 = vrot.slane %v595, 1
        %v598 = vsel %vm530, %v593, %v597
        %v599 = vshrl.u32 %v527, 16
        %v601 = vor.u32 %v599, %v597
        %v603 = vshll.u32 %v528, 16
        %v605 = vrot.slane %v603, 1
        %v606 = vsel %vm530, %v601, %v605
        %v607 = vshrl.u32 %v528, 16
        %v609 = vor.u32 %v607, %v605
        %v611 = vshll.u32 %v529, 16
        %v613 = vrot.slane %v611, 1
        %v614 = vsel %vm530, %v609, %v613
        %v618 = vunpack.c.l.b16 %v474
        %v619 = vunpack.c.l.b16 %v475
        %v620 = vunpack.c.l.b16 %v476
        %v621 = vpack.c.b16 %v619, %v618
        %v622 = vpack.c.b16 %v620, %v620
        %v625 = vsel %vm338, %v542, 0
        %v628 = vsel %vm338, %v550, 0
        %v631 = vsel %vm338, %v558, 0
        %v634 = vsel %vm338, %v566, 0
        %v637 = vsel %vm338, %v574, 0
        %v640 = vsel %vm338, %v582, 0
        %v643 = vsel %vm338, %v590, 0
        %v646 = vsel %vm338, %v598, 0
        %v649 = vsel %vm338, %v606, 0
        %v652 = vsel %vm338, %v614, 0
        %v655 = vsel %vm369, %v622, 0
        %657 = vmatpush.bf16.msra.mxu0 0
        %658 = vmatpush.bf16.msra.mxu0 0
        %659 = vmatpush.bf16.msra.mxu0 0
        %660 = vmatpush.bf16.msra.mxu0 0
        %661 = vmatpush.bf16.msra.mxu0 0
        %662 = vmatpush.bf16.msra.mxu0 0
        %663 = vmatpush.bf16.msra.mxu0 %v655
        %664 = vmatpush.bf16.msra.mxu0 %v621
        %665 = vmatmul.bf16.gmra.mxu0 %v625
        %v666 = vpop.f32.mrf.mxu0
        %v667 = vadd.f32 0.0, %v666
        %v668 = vpop.f32.mrf.mxu0
        %v669 = vadd.f32 0.0, %v668
        %670 = vmatmul.bf16.gmra.mxu0 %v628
        %v671 = vpop.f32.mrf.mxu0
        %v672 = vadd.f32 0.0, %v671
        %v673 = vpop.f32.mrf.mxu0
        %v674 = vadd.f32 0.0, %v673
        %675 = vmatmul.bf16.gmra.mxu0 %v631
        %v676 = vpop.f32.mrf.mxu0
        %v677 = vadd.f32 0.0, %v676
        %v678 = vpop.f32.mrf.mxu0
        %v679 = vadd.f32 0.0, %v678
        %680 = vmatmul.bf16.gmra.mxu0 %v634
        %v681 = vpop.f32.mrf.mxu0
        %v682 = vadd.f32 0.0, %v681
        %v683 = vpop.f32.mrf.mxu0
        %v684 = vadd.f32 0.0, %v683
        %685 = vmatmul.bf16.gmra.mxu0 %v637
        %v686 = vpop.f32.mrf.mxu0
        %v687 = vadd.f32 0.0, %v686
        %v688 = vpop.f32.mrf.mxu0
        %v689 = vadd.f32 0.0, %v688
        %690 = vmatmul.bf16.gmra.mxu0 %v640
        %v691 = vpop.f32.mrf.mxu0
        %v692 = vadd.f32 0.0, %v691
        %v693 = vpop.f32.mrf.mxu0
        %v694 = vadd.f32 0.0, %v693
        %695 = vmatmul.bf16.gmra.mxu0 %v643
        %v696 = vpop.f32.mrf.mxu0
        %v697 = vadd.f32 0.0, %v696
        %v698 = vpop.f32.mrf.mxu0
        %v699 = vadd.f32 0.0, %v698
        %700 = vmatmul.bf16.gmra.mxu0 %v646
        %v701 = vpop.f32.mrf.mxu0
        %v702 = vadd.f32 0.0, %v701
        %v703 = vpop.f32.mrf.mxu0
        %v704 = vadd.f32 0.0, %v703
        %705 = vmatmul.bf16.gmra.mxu0 %v649
        %v706 = vpop.f32.mrf.mxu0
        %v707 = vadd.f32 0.0, %v706
        %v708 = vpop.f32.mrf.mxu0
        %v709 = vadd.f32 0.0, %v708
        %710 = vmatmul.bf16.gmra.mxu0 %v652
        %v711 = vpop.f32.mrf.mxu0
        %v712 = vadd.f32 0.0, %v711
        %v713 = vpop.f32.mrf.mxu0
        %v714 = vadd.f32 0.0, %v713
        %715 = vdwg.mxu0
        %v716 = vld [vmem:[#allocation2] sm:$0xff]
        %v717 = vld [vmem:[#allocation2 + $0x8] sm:$0xff]
        %v718 = vld [vmem:[#allocation2 + $0x10] sm:$0xff]
        %v719 = vld [vmem:[#allocation2 + $0x18] sm:$0xff]
        %v720 = vld [vmem:[#allocation2 + $0x20] sm:$0xff]
        %v721 = vld [vmem:[#allocation2 + $0x28] sm:$0xff]
        %v722 = vld [vmem:[#allocation2 + $0x30] sm:$0xff]
        %v723 = vld [vmem:[#allocation2 + $0x38] sm:$0xff]
        %v724 = vld [vmem:[#allocation2 + $0x40] sm:$0xff]
        %v725 = vld [vmem:[#allocation2 + $0x48] sm:$0xff]
        %v726 = vld [vmem:[#allocation2 + $0x50] sm:$0xff]
        %v727 = vld [vmem:[#allocation2 + $0x58] sm:$0xff]
        %v728 = vld [vmem:[#allocation2 + $0x60] sm:$0xff]
        %v729 = vld [vmem:[#allocation2 + $0x68] sm:$0xff]
        %v730 = vld [vmem:[#allocation2 + $0x70] sm:$0xff]
        %v731 = vld [vmem:[#allocation2 + $0x78] sm:$0xff]
        %v732 = vld [vmem:[#allocation2 + $0x80] sm:$0xff]
        %v733 = vld [vmem:[#allocation2 + $0x88] sm:$0xff]
        %v734 = vld [vmem:[#allocation2 + $0x90] sm:$0xff]
        %v735 = vld [vmem:[#allocation2 + $0x98] sm:$0xff]
        %v736 = vadd.f32 %v716, %v667
        %v737 = vadd.f32 %v717, %v669
        %v738 = vadd.f32 %v718, %v672
        %v739 = vadd.f32 %v719, %v674
        %v740 = vadd.f32 %v720, %v677
        %v741 = vadd.f32 %v721, %v679
        %v742 = vadd.f32 %v722, %v682
        %v743 = vadd.f32 %v723, %v684
        %v744 = vadd.f32 %v724, %v687
        %v745 = vadd.f32 %v725, %v689
        %v746 = vadd.f32 %v726, %v692
        %v747 = vadd.f32 %v727, %v694
        %v748 = vadd.f32 %v728, %v697
        %v749 = vadd.f32 %v729, %v699
        %v750 = vadd.f32 %v730, %v702
        %v751 = vadd.f32 %v731, %v704
        %v752 = vadd.f32 %v732, %v707
        %v753 = vadd.f32 %v733, %v709
        %v754 = vadd.f32 %v734, %v712
        %v755 = vadd.f32 %v735, %v714
        %756 = vst [vmem:[#allocation2] sm:$0xff] %v736
        %757 = vst [vmem:[#allocation2 + $0x8] sm:$0xff] %v737
        %758 = vst [vmem:[#allocation2 + $0x10] sm:$0xff] %v738
        %759 = vst [vmem:[#allocation2 + $0x18] sm:$0xff] %v739
        %760 = vst [vmem:[#allocation2 + $0x20] sm:$0xff] %v740
        %761 = vst [vmem:[#allocation2 + $0x28] sm:$0xff] %v741
        %762 = vst [vmem:[#allocation2 + $0x30] sm:$0xff] %v742
        %763 = vst [vmem:[#allocation2 + $0x38] sm:$0xff] %v743
        %764 = vst [vmem:[#allocation2 + $0x40] sm:$0xff] %v744
        %765 = vst [vmem:[#allocation2 + $0x48] sm:$0xff] %v745
        %766 = vst [vmem:[#allocation2 + $0x50] sm:$0xff] %v746
        %767 = vst [vmem:[#allocation2 + $0x58] sm:$0xff] %v747
        %768 = vst [vmem:[#allocation2 + $0x60] sm:$0xff] %v748
        %769 = vst [vmem:[#allocation2 + $0x68] sm:$0xff] %v749
        %770 = vst [vmem:[#allocation2 + $0x70] sm:$0xff] %v750
        %771 = vst [vmem:[#allocation2 + $0x78] sm:$0xff] %v751
        %772 = vst [vmem:[#allocation2 + $0x80] sm:$0xff] %v752
        %773 = vst [vmem:[#allocation2 + $0x88] sm:$0xff] %v753
        %774 = vst [vmem:[#allocation2 + $0x90] sm:$0xff] %v754
        %775 = vst [vmem:[#allocation2 + $0x98] sm:$0xff] %v755
        %v776 = vld [vmem:[%s244] sm:$0xe]
        %v777 = vld [vmem:[%s244 + $0x4] sm:$0xf]
        %v778 = vld [vmem:[%s244 + $0x8] sm:$0xf]
        %v779 = vld [vmem:[%s244 + $0xc] sm:$0xf]
        %v780 = vld [vmem:[%s244 + $0x10] sm:$0xf]
        %v781 = vld [vmem:[%s244 + $0x14] sm:$0xf]
        %v782 = vld [vmem:[%s244 + $0x18] sm:$0xf]
        %v783 = vld [vmem:[%s244 + $0x1c] sm:$0xf]
        %v784 = vld [vmem:[%s244 + $0x20] sm:$0xf]
        %v785 = vld [vmem:[%s244 + $0x24] sm:$0xf]
        %v786 = vld [vmem:[%s244 + $0x28] sm:$0xf]
        %v787 = vld [vmem:[%s244 + $0x2c] sm:$0xf]
        %v788 = vld [vmem:[%s244 + $0x30] sm:$0xf]
        %v789 = vld [vmem:[%s244 + $0x34] sm:$0xf]
        %v790 = vld [vmem:[%s244 + $0x38] sm:$0xf]
        %v791 = vld [vmem:[%s244 + $0x3c] sm:$0xf]
        %v792 = vld [vmem:[%s244 + $0x40] sm:$0xf]
        %v793 = vld [vmem:[%s244 + $0x44] sm:$0xf]
        %v794 = vld [vmem:[%s244 + $0x48] sm:$0xf]
        %v795 = vld [vmem:[%s244 + $0x4c] sm:$0xf]
        %v796 = vld [vmem:[%s244 + $0x50] sm:$0x1]
        %s797 = scalar_lea.vmem %s248, 24
        %v798 = vld [vmem:[%s797] sm:$0xf]
        %v799 = vld [vmem:[%s797 + $0x4] sm:$0xf]
        %v800 = vld [vmem:[%s797 + $0x8] sm:$0xf]
        %v822 = vunpack.c.l.b16 %v776
        %v823 = vunpack.c.l.b16 %v777
        %v824 = vunpack.c.l.b16 %v778
        %v825 = vunpack.c.l.b16 %v779
        %v826 = vunpack.c.l.b16 %v780
        %v827 = vunpack.c.l.b16 %v781
        %v828 = vunpack.c.l.b16 %v782
        %v829 = vunpack.c.l.b16 %v783
        %v830 = vunpack.c.l.b16 %v784
        %v831 = vunpack.c.l.b16 %v785
        %v832 = vunpack.c.l.b16 %v786
        %v833 = vunpack.c.l.b16 %v787
        %v834 = vunpack.c.l.b16 %v788
        %v835 = vunpack.c.l.b16 %v789
        %v836 = vunpack.c.l.b16 %v790
        %v837 = vunpack.c.l.b16 %v791
        %v838 = vunpack.c.l.b16 %v792
        %v839 = vunpack.c.l.b16 %v793
        %v840 = vunpack.c.l.b16 %v794
        %v841 = vunpack.c.l.b16 %v795
        %v842 = vunpack.c.l.b16 %v796
        %v843 = vpack.c.b16 %v823, %v822
        %v844 = vpack.c.b16 %v825, %v824
        %v845 = vpack.c.b16 %v827, %v826
        %v846 = vpack.c.b16 %v829, %v828
        %v847 = vpack.c.b16 %v831, %v830
        %v848 = vpack.c.b16 %v833, %v832
        %v849 = vpack.c.b16 %v835, %v834
        %v850 = vpack.c.b16 %v837, %v836
        %v851 = vpack.c.b16 %v839, %v838
        %v852 = vpack.c.b16 %v841, %v840
        %v853 = vpack.c.b16 %v842, %v842
        %vm854 = vcmask 1046528
        %v855 = vrot.slane %v843, 1
        %v856 = vrot.slane %v844, 1
        %v857 = vsel %vm854, %v855, %v856
        %v858 = vrot.slane %v845, 1
        %v859 = vsel %vm854, %v856, %v858
        %v860 = vrot.slane %v846, 1
        %v861 = vsel %vm854, %v858, %v860
        %v862 = vrot.slane %v847, 1
        %v863 = vsel %vm854, %v860, %v862
        %v864 = vrot.slane %v848, 1
        %v865 = vsel %vm854, %v862, %v864
        %v866 = vrot.slane %v849, 1
        %v867 = vsel %vm854, %v864, %v866
        %v868 = vrot.slane %v850, 1
        %v869 = vsel %vm854, %v866, %v868
        %v870 = vrot.slane %v851, 1
        %v871 = vsel %vm854, %v868, %v870
        %v872 = vrot.slane %v852, 1
        %v873 = vsel %vm854, %v870, %v872
        %v874 = vrot.slane %v853, 1
        %v875 = vsel %vm854, %v872, %v874
        %v879 = vunpack.c.l.b16 %v798
        %v880 = vunpack.c.l.b16 %v799
        %v881 = vunpack.c.l.b16 %v800
        %v882 = vpack.c.b16 %v880, %v879
        %v883 = vpack.c.b16 %v881, %v881
        %v886 = vsel %vm338, %v857, 0
        %v889 = vsel %vm338, %v859, 0
        %v892 = vsel %vm338, %v861, 0
        %v895 = vsel %vm338, %v863, 0
        %v898 = vsel %vm338, %v865, 0
        %v901 = vsel %vm338, %v867, 0
        %v904 = vsel %vm338, %v869, 0
        %v907 = vsel %vm338, %v871, 0
        %v910 = vsel %vm338, %v873, 0
        %v913 = vsel %vm338, %v875, 0
        %v916 = vsel %vm369, %v883, 0
        %918 = vmatpush.bf16.msra.mxu0 0
        %919 = vmatpush.bf16.msra.mxu0 0
        %920 = vmatpush.bf16.msra.mxu0 0
        %921 = vmatpush.bf16.msra.mxu0 0
        %922 = vmatpush.bf16.msra.mxu0 0
        %923 = vmatpush.bf16.msra.mxu0 0
        %924 = vmatpush.bf16.msra.mxu0 %v916
        %925 = vmatpush.bf16.msra.mxu0 %v882
        %926 = vmatmul.bf16.gmra.mxu0 %v886
        %v927 = vpop.f32.mrf.mxu0
        %v928 = vadd.f32 0.0, %v927
        %v929 = vpop.f32.mrf.mxu0
        %v930 = vadd.f32 0.0, %v929
        %931 = vmatmul.bf16.gmra.mxu0 %v889
        %v932 = vpop.f32.mrf.mxu0
        %v933 = vadd.f32 0.0, %v932
        %v934 = vpop.f32.mrf.mxu0
        %v935 = vadd.f32 0.0, %v934
        %936 = vmatmul.bf16.gmra.mxu0 %v892
        %v937 = vpop.f32.mrf.mxu0
        %v938 = vadd.f32 0.0, %v937
        %v939 = vpop.f32.mrf.mxu0
        %v940 = vadd.f32 0.0, %v939
        %941 = vmatmul.bf16.gmra.mxu0 %v895
        %v942 = vpop.f32.mrf.mxu0
        %v943 = vadd.f32 0.0, %v942
        %v944 = vpop.f32.mrf.mxu0
        %v945 = vadd.f32 0.0, %v944
        %946 = vmatmul.bf16.gmra.mxu0 %v898
        %v947 = vpop.f32.mrf.mxu0
        %v948 = vadd.f32 0.0, %v947
        %v949 = vpop.f32.mrf.mxu0
        %v950 = vadd.f32 0.0, %v949
        %951 = vmatmul.bf16.gmra.mxu0 %v901
        %v952 = vpop.f32.mrf.mxu0
        %v953 = vadd.f32 0.0, %v952
        %v954 = vpop.f32.mrf.mxu0
        %v955 = vadd.f32 0.0, %v954
        %956 = vmatmul.bf16.gmra.mxu0 %v904
        %v957 = vpop.f32.mrf.mxu0
        %v958 = vadd.f32 0.0, %v957
        %v959 = vpop.f32.mrf.mxu0
        %v960 = vadd.f32 0.0, %v959
        %961 = vmatmul.bf16.gmra.mxu0 %v907
        %v962 = vpop.f32.mrf.mxu0
        %v963 = vadd.f32 0.0, %v962
        %v964 = vpop.f32.mrf.mxu0
        %v965 = vadd.f32 0.0, %v964
        %966 = vmatmul.bf16.gmra.mxu0 %v910
        %v967 = vpop.f32.mrf.mxu0
        %v968 = vadd.f32 0.0, %v967
        %v969 = vpop.f32.mrf.mxu0
        %v970 = vadd.f32 0.0, %v969
        %971 = vmatmul.bf16.gmra.mxu0 %v913
        %v972 = vpop.f32.mrf.mxu0
        %v973 = vadd.f32 0.0, %v972
        %v974 = vpop.f32.mrf.mxu0
        %v975 = vadd.f32 0.0, %v974
        %976 = vdwg.mxu0
        %v977 = vld [vmem:[#allocation2] sm:$0xff]
        %v978 = vld [vmem:[#allocation2 + $0x8] sm:$0xff]
        %v979 = vld [vmem:[#allocation2 + $0x10] sm:$0xff]
        %v980 = vld [vmem:[#allocation2 + $0x18] sm:$0xff]
        %v981 = vld [vmem:[#allocation2 + $0x20] sm:$0xff]
        %v982 = vld [vmem:[#allocation2 + $0x28] sm:$0xff]
        %v983 = vld [vmem:[#allocation2 + $0x30] sm:$0xff]
        %v984 = vld [vmem:[#allocation2 + $0x38] sm:$0xff]
        %v985 = vld [vmem:[#allocation2 + $0x40] sm:$0xff]
        %v986 = vld [vmem:[#allocation2 + $0x48] sm:$0xff]
        %v987 = vld [vmem:[#allocation2 + $0x50] sm:$0xff]
        %v988 = vld [vmem:[#allocation2 + $0x58] sm:$0xff]
        %v989 = vld [vmem:[#allocation2 + $0x60] sm:$0xff]
        %v990 = vld [vmem:[#allocation2 + $0x68] sm:$0xff]
        %v991 = vld [vmem:[#allocation2 + $0x70] sm:$0xff]
        %v992 = vld [vmem:[#allocation2 + $0x78] sm:$0xff]
        %v993 = vld [vmem:[#allocation2 + $0x80] sm:$0xff]
        %v994 = vld [vmem:[#allocation2 + $0x88] sm:$0xff]
        %v995 = vld [vmem:[#allocation2 + $0x90] sm:$0xff]
        %v996 = vld [vmem:[#allocation2 + $0x98] sm:$0xff]
        %v997 = vadd.f32 %v977, %v928
        %v998 = vadd.f32 %v978, %v930
        %v999 = vadd.f32 %v979, %v933
        %v1000 = vadd.f32 %v980, %v935
        %v1001 = vadd.f32 %v981, %v938
        %v1002 = vadd.f32 %v982, %v940
        %v1003 = vadd.f32 %v983, %v943
        %v1004 = vadd.f32 %v984, %v945
        %v1005 = vadd.f32 %v985, %v948
        %v1006 = vadd.f32 %v986, %v950
        %v1007 = vadd.f32 %v987, %v953
        %v1008 = vadd.f32 %v988, %v955
        %v1009 = vadd.f32 %v989, %v958
        %v1010 = vadd.f32 %v990, %v960
        %v1011 = vadd.f32 %v991, %v963
        %v1012 = vadd.f32 %v992, %v965
        %v1013 = vadd.f32 %v993, %v968
        %v1014 = vadd.f32 %v994, %v970
        %v1015 = vadd.f32 %v995, %v973
        %v1016 = vadd.f32 %v996, %v975
        %1017 = vst [vmem:[#allocation2] sm:$0xff] %v997
        %1018 = vst [vmem:[#allocation2 + $0x8] sm:$0xff] %v998
        %1019 = vst [vmem:[#allocation2 + $0x10] sm:$0xff] %v999
        %1020 = vst [vmem:[#allocation2 + $0x18] sm:$0xff] %v1000
        %1021 = vst [vmem:[#allocation2 + $0x20] sm:$0xff] %v1001
        %1022 = vst [vmem:[#allocation2 + $0x28] sm:$0xff] %v1002
        %1023 = vst [vmem:[#allocation2 + $0x30] sm:$0xff] %v1003
        %1024 = vst [vmem:[#allocation2 + $0x38] sm:$0xff] %v1004
        %1025 = vst [vmem:[#allocation2 + $0x40] sm:$0xff] %v1005
        %1026 = vst [vmem:[#allocation2 + $0x48] sm:$0xff] %v1006
        %1027 = vst [vmem:[#allocation2 + $0x50] sm:$0xff] %v1007
        %1028 = vst [vmem:[#allocation2 + $0x58] sm:$0xff] %v1008
        %1029 = vst [vmem:[#allocation2 + $0x60] sm:$0xff] %v1009
        %1030 = vst [vmem:[#allocation2 + $0x68] sm:$0xff] %v1010
        %1031 = vst [vmem:[#allocation2 + $0x70] sm:$0xff] %v1011
        %1032 = vst [vmem:[#allocation2 + $0x78] sm:$0xff] %v1012
        %1033 = vst [vmem:[#allocation2 + $0x80] sm:$0xff] %v1013
        %1034 = vst [vmem:[#allocation2 + $0x88] sm:$0xff] %v1014
        %1035 = vst [vmem:[#allocation2 + $0x90] sm:$0xff] %v1015
        %1036 = vst [vmem:[#allocation2 + $0x98] sm:$0xff] %v1016
        %v1037 = vld [vmem:[%s244 + $0x8] sm:$0xf]
        %v1038 = vld [vmem:[%s244 + $0xc] sm:$0xf]
        %v1039 = vld [vmem:[%s244 + $0x10] sm:$0xf]
        %v1040 = vld [vmem:[%s244 + $0x14] sm:$0xf]
        %v1041 = vld [vmem:[%s244 + $0x18] sm:$0xf]
        %v1042 = vld [vmem:[%s244 + $0x1c] sm:$0xf]
        %v1043 = vld [vmem:[%s244 + $0x20] sm:$0xf]
        %v1044 = vld [vmem:[%s244 + $0x24] sm:$0xf]
        %v1045 = vld [vmem:[%s244 + $0x28] sm:$0xf]
        %v1046 = vld [vmem:[%s244 + $0x2c] sm:$0xf]
        %v1047 = vld [vmem:[%s244 + $0x30] sm:$0xf]
        %v1048 = vld [vmem:[%s244 + $0x34] sm:$0xf]
        %v1049 = vld [vmem:[%s244 + $0x38] sm:$0xf]
        %v1050 = vld [vmem:[%s244 + $0x3c] sm:$0xf]
        %v1051 = vld [vmem:[%s244 + $0x40] sm:$0xf]
        %v1052 = vld [vmem:[%s244 + $0x44] sm:$0xf]
        %v1053 = vld [vmem:[%s244 + $0x48] sm:$0xf]
        %v1054 = vld [vmem:[%s244 + $0x4c] sm:$0xf]
        %v1055 = vld [vmem:[%s244 + $0x50] sm:$0xf]
        %v1056 = vld [vmem:[%s244 + $0x54] sm:$0xf]
        %s1057 = scalar_lea.vmem %s248, 36
        %v1058 = vld [vmem:[%s1057] sm:$0xf]
        %v1059 = vld [vmem:[%s1057 + $0x4] sm:$0xf]
        %v1060 = vld [vmem:[%s1057 + $0x8] sm:$0xf]
        %v1081 = vunpack.c.l.b16 %v1037
        %v1082 = vunpack.c.l.b16 %v1038
        %v1083 = vunpack.c.l.b16 %v1039
        %v1084 = vunpack.c.l.b16 %v1040
        %v1085 = vunpack.c.l.b16 %v1041
        %v1086 = vunpack.c.l.b16 %v1042
        %v1087 = vunpack.c.l.b16 %v1043
        %v1088 = vunpack.c.l.b16 %v1044
        %v1089 = vunpack.c.l.b16 %v1045
        %v1090 = vunpack.c.l.b16 %v1046
        %v1091 = vunpack.c.l.b16 %v1047
        %v1092 = vunpack.c.l.b16 %v1048
        %v1093 = vunpack.c.l.b16 %v1049
        %v1094 = vunpack.c.l.b16 %v1050
        %v1095 = vunpack.c.l.b16 %v1051
        %v1096 = vunpack.c.l.b16 %v1052
        %v1097 = vunpack.c.l.b16 %v1053
        %v1098 = vunpack.c.l.b16 %v1054
        %v1099 = vunpack.c.l.b16 %v1055
        %v1100 = vunpack.c.l.b16 %v1056
        %v1101 = vpack.c.b16 %v1082, %v1081
        %v1102 = vpack.c.b16 %v1084, %v1083
        %v1103 = vpack.c.b16 %v1086, %v1085
        %v1104 = vpack.c.b16 %v1088, %v1087
        %v1105 = vpack.c.b16 %v1090, %v1089
        %v1106 = vpack.c.b16 %v1092, %v1091
        %v1107 = vpack.c.b16 %v1094, %v1093
        %v1108 = vpack.c.b16 %v1096, %v1095
        %v1109 = vpack.c.b16 %v1098, %v1097
        %v1110 = vpack.c.b16 %v1100, %v1099
        %v1114 = vunpack.c.l.b16 %v1058
        %v1115 = vunpack.c.l.b16 %v1059
        %v1116 = vunpack.c.l.b16 %v1060
        %v1117 = vpack.c.b16 %v1115, %v1114
        %v1118 = vpack.c.b16 %v1116, %v1116
        %v1121 = vsel %vm338, %v1101, 0
        %v1124 = vsel %vm338, %v1102, 0
        %v1127 = vsel %vm338, %v1103, 0
        %v1130 = vsel %vm338, %v1104, 0
        %v1133 = vsel %vm338, %v1105, 0
        %v1136 = vsel %vm338, %v1106, 0
        %v1139 = vsel %vm338, %v1107, 0
        %v1142 = vsel %vm338, %v1108, 0
        %v1145 = vsel %vm338, %v1109, 0
        %v1148 = vsel %vm338, %v1110, 0
        %v1151 = vsel %vm369, %v1118, 0
        %1153 = vmatpush.bf16.msra.mxu0 0
        %1154 = vmatpush.bf16.msra.mxu0 0
        %1155 = vmatpush.bf16.msra.mxu0 0
        %1156 = vmatpush.bf16.msra.mxu0 0
        %1157 = vmatpush.bf16.msra.mxu0 0
        %1158 = vmatpush.bf16.msra.mxu0 0
        %1159 = vmatpush.bf16.msra.mxu0 %v1151
        %1160 = vmatpush.bf16.msra.mxu0 %v1117
        %1161 = vmatmul.bf16.gmra.mxu0 %v1121
        %v1162 = vpop.f32.mrf.mxu0
        %v1163 = vadd.f32 0.0, %v1162
        %v1164 = vpop.f32.mrf.mxu0
        %v1165 = vadd.f32 0.0, %v1164
        %1166 = vmatmul.bf16.gmra.mxu0 %v1124
        %v1167 = vpop.f32.mrf.mxu0
        %v1168 = vadd.f32 0.0, %v1167
        %v1169 = vpop.f32.mrf.mxu0
        %v1170 = vadd.f32 0.0, %v1169
        %1171 = vmatmul.bf16.gmra.mxu0 %v1127
        %v1172 = vpop.f32.mrf.mxu0
        %v1173 = vadd.f32 0.0, %v1172
        %v1174 = vpop.f32.mrf.mxu0
        %v1175 = vadd.f32 0.0, %v1174
        %1176 = vmatmul.bf16.gmra.mxu0 %v1130
        %v1177 = vpop.f32.mrf.mxu0
        %v1178 = vadd.f32 0.0, %v1177
        %v1179 = vpop.f32.mrf.mxu0
        %v1180 = vadd.f32 0.0, %v1179
        %1181 = vmatmul.bf16.gmra.mxu0 %v1133
        %v1182 = vpop.f32.mrf.mxu0
        %v1183 = vadd.f32 0.0, %v1182
        %v1184 = vpop.f32.mrf.mxu0
        %v1185 = vadd.f32 0.0, %v1184
        %1186 = vmatmul.bf16.gmra.mxu0 %v1136
        %v1187 = vpop.f32.mrf.mxu0
        %v1188 = vadd.f32 0.0, %v1187
        %v1189 = vpop.f32.mrf.mxu0
        %v1190 = vadd.f32 0.0, %v1189
        %1191 = vmatmul.bf16.gmra.mxu0 %v1139
        %v1192 = vpop.f32.mrf.mxu0
        %v1193 = vadd.f32 0.0, %v1192
        %v1194 = vpop.f32.mrf.mxu0
        %v1195 = vadd.f32 0.0, %v1194
        %1196 = vmatmul.bf16.gmra.mxu0 %v1142
        %v1197 = vpop.f32.mrf.mxu0
        %v1198 = vadd.f32 0.0, %v1197
        %v1199 = vpop.f32.mrf.mxu0
        %v1200 = vadd.f32 0.0, %v1199
        %1201 = vmatmul.bf16.gmra.mxu0 %v1145
        %v1202 = vpop.f32.mrf.mxu0
        %v1203 = vadd.f32 0.0, %v1202
        %v1204 = vpop.f32.mrf.mxu0
        %v1205 = vadd.f32 0.0, %v1204
        %1206 = vmatmul.bf16.gmra.mxu0 %v1148
        %v1207 = vpop.f32.mrf.mxu0
        %v1208 = vadd.f32 0.0, %v1207
        %v1209 = vpop.f32.mrf.mxu0
        %v1210 = vadd.f32 0.0, %v1209
        %1211 = vdwg.mxu0
        %v1212 = vld [vmem:[#allocation2] sm:$0xff]
        %v1213 = vld [vmem:[#allocation2 + $0x8] sm:$0xff]
        %v1214 = vld [vmem:[#allocation2 + $0x10] sm:$0xff]
        %v1215 = vld [vmem:[#allocation2 + $0x18] sm:$0xff]
        %v1216 = vld [vmem:[#allocation2 + $0x20] sm:$0xff]
        %v1217 = vld [vmem:[#allocation2 + $0x28] sm:$0xff]
        %v1218 = vld [vmem:[#allocation2 + $0x30] sm:$0xff]
        %v1219 = vld [vmem:[#allocation2 + $0x38] sm:$0xff]
        %v1220 = vld [vmem:[#allocation2 + $0x40] sm:$0xff]
        %v1221 = vld [vmem:[#allocation2 + $0x48] sm:$0xff]
        %v1222 = vld [vmem:[#allocation2 + $0x50] sm:$0xff]
        %v1223 = vld [vmem:[#allocation2 + $0x58] sm:$0xff]
        %v1224 = vld [vmem:[#allocation2 + $0x60] sm:$0xff]
        %v1225 = vld [vmem:[#allocation2 + $0x68] sm:$0xff]
        %v1226 = vld [vmem:[#allocation2 + $0x70] sm:$0xff]
        %v1227 = vld [vmem:[#allocation2 + $0x78] sm:$0xff]
        %v1228 = vld [vmem:[#allocation2 + $0x80] sm:$0xff]
        %v1229 = vld [vmem:[#allocation2 + $0x88] sm:$0xff]
        %v1230 = vld [vmem:[#allocation2 + $0x90] sm:$0xff]
        %v1231 = vld [vmem:[#allocation2 + $0x98] sm:$0xff]
        %v1232 = vadd.f32 %v1212, %v1163
        %v1233 = vadd.f32 %v1213, %v1165
        %v1234 = vadd.f32 %v1214, %v1168
        %v1235 = vadd.f32 %v1215, %v1170
        %v1236 = vadd.f32 %v1216, %v1173
        %v1237 = vadd.f32 %v1217, %v1175
        %v1238 = vadd.f32 %v1218, %v1178
        %v1239 = vadd.f32 %v1219, %v1180
        %v1240 = vadd.f32 %v1220, %v1183
        %v1241 = vadd.f32 %v1221, %v1185
        %v1242 = vadd.f32 %v1222, %v1188
        %v1243 = vadd.f32 %v1223, %v1190
        %v1244 = vadd.f32 %v1224, %v1193
        %v1245 = vadd.f32 %v1225, %v1195
        %v1246 = vadd.f32 %v1226, %v1198
        %v1247 = vadd.f32 %v1227, %v1200
        %v1248 = vadd.f32 %v1228, %v1203
        %v1249 = vadd.f32 %v1229, %v1205
        %v1250 = vadd.f32 %v1230, %v1208
        %v1251 = vadd.f32 %v1231, %v1210
        %1252 = vst [vmem:[#allocation2] sm:$0xff] %v1232
        %1253 = vst [vmem:[#allocation2 + $0x8] sm:$0xff] %v1233
        %1254 = vst [vmem:[#allocation2 + $0x10] sm:$0xff] %v1234
        %1255 = vst [vmem:[#allocation2 + $0x18] sm:$0xff] %v1235
        %1256 = vst [vmem:[#allocation2 + $0x20] sm:$0xff] %v1236
        %1257 = vst [vmem:[#allocation2 + $0x28] sm:$0xff] %v1237
        %1258 = vst [vmem:[#allocation2 + $0x30] sm:$0xff] %v1238
        %1259 = vst [vmem:[#allocation2 + $0x38] sm:$0xff] %v1239
        %1260 = vst [vmem:[#allocation2 + $0x40] sm:$0xff] %v1240
        %1261 = vst [vmem:[#allocation2 + $0x48] sm:$0xff] %v1241
        %1262 = vst [vmem:[#allocation2 + $0x50] sm:$0xff] %v1242
        %1263 = vst [vmem:[#allocation2 + $0x58] sm:$0xff] %v1243
        %1264 = vst [vmem:[#allocation2 + $0x60] sm:$0xff] %v1244
        %1265 = vst [vmem:[#allocation2 + $0x68] sm:$0xff] %v1245
        %1266 = vst [vmem:[#allocation2 + $0x70] sm:$0xff] %v1246
        %1267 = vst [vmem:[#allocation2 + $0x78] sm:$0xff] %v1247
        %1268 = vst [vmem:[#allocation2 + $0x80] sm:$0xff] %v1248
        %1269 = vst [vmem:[#allocation2 + $0x88] sm:$0xff] %v1249
        %1270 = vst [vmem:[#allocation2 + $0x90] sm:$0xff] %v1250
        %1271 = vst [vmem:[#allocation2 + $0x98] sm:$0xff] %v1251
        %v1272 = vld [vmem:[%s244 + $0x8] sm:$0xf]
        %v1273 = vld [vmem:[%s244 + $0xc] sm:$0xf]
        %v1274 = vld [vmem:[%s244 + $0x10] sm:$0xf]
        %v1275 = vld [vmem:[%s244 + $0x14] sm:$0xf]
        %v1276 = vld [vmem:[%s244 + $0x18] sm:$0xf]
        %v1277 = vld [vmem:[%s244 + $0x1c] sm:$0xf]
        %v1278 = vld [vmem:[%s244 + $0x20] sm:$0xf]
        %v1279 = vld [vmem:[%s244 + $0x24] sm:$0xf]
        %v1280 = vld [vmem:[%s244 + $0x28] sm:$0xf]
        %v1281 = vld [vmem:[%s244 + $0x2c] sm:$0xf]
        %v1282 = vld [vmem:[%s244 + $0x30] sm:$0xf]
        %v1283 = vld [vmem:[%s244 + $0x34] sm:$0xf]
        %v1284 = vld [vmem:[%s244 + $0x38] sm:$0xf]
        %v1285 = vld [vmem:[%s244 + $0x3c] sm:$0xf]
        %v1286 = vld [vmem:[%s244 + $0x40] sm:$0xf]
        %v1287 = vld [vmem:[%s244 + $0x44] sm:$0xf]
        %v1288 = vld [vmem:[%s244 + $0x48] sm:$0xf]
        %v1289 = vld [vmem:[%s244 + $0x4c] sm:$0xf]
        %v1290 = vld [vmem:[%s244 + $0x50] sm:$0xf]
        %v1291 = vld [vmem:[%s244 + $0x54] sm:$0xf]
        %v1292 = vld [vmem:[%s244 + $0x58] sm:$0x1]
        %s1293 = scalar_lea.vmem %s248, 48
        %v1294 = vld [vmem:[%s1293] sm:$0xf]
        %v1295 = vld [vmem:[%s1293 + $0x4] sm:$0xf]
        %v1296 = vld [vmem:[%s1293 + $0x8] sm:$0xf]
        %v1318 = vunpack.c.l.b16 %v1272
        %v1319 = vunpack.c.l.b16 %v1273
        %v1320 = vunpack.c.l.b16 %v1274
        %v1321 = vunpack.c.l.b16 %v1275
        %v1322 = vunpack.c.l.b16 %v1276
        %v1323 = vunpack.c.l.b16 %v1277
        %v1324 = vunpack.c.l.b16 %v1278
        %v1325 = vunpack.c.l.b16 %v1279
        %v1326 = vunpack.c.l.b16 %v1280
        %v1327 = vunpack.c.l.b16 %v1281
        %v1328 = vunpack.c.l.b16 %v1282
        %v1329 = vunpack.c.l.b16 %v1283
        %v1330 = vunpack.c.l.b16 %v1284
        %v1331 = vunpack.c.l.b16 %v1285
        %v1332 = vunpack.c.l.b16 %v1286
        %v1333 = vunpack.c.l.b16 %v1287
        %v1334 = vunpack.c.l.b16 %v1288
        %v1335 = vunpack.c.l.b16 %v1289
        %v1336 = vunpack.c.l.b16 %v1290
        %v1337 = vunpack.c.l.b16 %v1291
        %v1338 = vunpack.c.l.b16 %v1292
        %v1339 = vpack.c.b16 %v1319, %v1318
        %v1340 = vpack.c.b16 %v1321, %v1320
        %v1341 = vpack.c.b16 %v1323, %v1322
        %v1342 = vpack.c.b16 %v1325, %v1324
        %v1343 = vpack.c.b16 %v1327, %v1326
        %v1344 = vpack.c.b16 %v1329, %v1328
        %v1345 = vpack.c.b16 %v1331, %v1330
        %v1346 = vpack.c.b16 %v1333, %v1332
        %v1347 = vpack.c.b16 %v1335, %v1334
        %v1348 = vpack.c.b16 %v1337, %v1336
        %v1349 = vpack.c.b16 %v1338, %v1338
        %v1351 = vshrl.u32 %v1339, 16
        %v1353 = vshll.u32 %v1339, 16
        %v1355 = vrot.slane %v1353, 1
        %v1356 = vor.u32 %v1351, %v1355
        %v1358 = vshll.u32 %v1340, 16
        %v1360 = vrot.slane %v1358, 1
        %v1361 = vsel %vm530, %v1356, %v1360
        %v1362 = vshrl.u32 %v1340, 16
        %v1364 = vor.u32 %v1362, %v1360
        %v1366 = vshll.u32 %v1341, 16
        %v1368 = vrot.slane %v1366, 1
        %v1369 = vsel %vm530, %v1364, %v1368
        %v1370 = vshrl.u32 %v1341, 16
        %v1372 = vor.u32 %v1370, %v1368
        %v1374 = vshll.u32 %v1342, 16
        %v1376 = vrot.slane %v1374, 1
        %v1377 = vsel %vm530, %v1372, %v1376
        %v1378 = vshrl.u32 %v1342, 16
        %v1380 = vor.u32 %v1378, %v1376
        %v1382 = vshll.u32 %v1343, 16
        %v1384 = vrot.slane %v1382, 1
        %v1385 = vsel %vm530, %v1380, %v1384
        %v1386 = vshrl.u32 %v1343, 16
        %v1388 = vor.u32 %v1386, %v1384
        %v1390 = vshll.u32 %v1344, 16
        %v1392 = vrot.slane %v1390, 1
        %v1393 = vsel %vm530, %v1388, %v1392
        %v1394 = vshrl.u32 %v1344, 16
        %v1396 = vor.u32 %v1394, %v1392
        %v1398 = vshll.u32 %v1345, 16
        %v1400 = vrot.slane %v1398, 1
        %v1401 = vsel %vm530, %v1396, %v1400
        %v1402 = vshrl.u32 %v1345, 16
        %v1404 = vor.u32 %v1402, %v1400
        %v1406 = vshll.u32 %v1346, 16
        %v1408 = vrot.slane %v1406, 1
        %v1409 = vsel %vm530, %v1404, %v1408
        %v1410 = vshrl.u32 %v1346, 16
        %v1412 = vor.u32 %v1410, %v1408
        %v1414 = vshll.u32 %v1347, 16
        %v1416 = vrot.slane %v1414, 1
        %v1417 = vsel %vm530, %v1412, %v1416
        %v1418 = vshrl.u32 %v1347, 16
        %v1420 = vor.u32 %v1418, %v1416
        %v1422 = vshll.u32 %v1348, 16
        %v1424 = vrot.slane %v1422, 1
        %v1425 = vsel %vm530, %v1420, %v1424
        %v1426 = vshrl.u32 %v1348, 16
        %v1428 = vor.u32 %v1426, %v1424
        %v1430 = vshll.u32 %v1349, 16
        %v1432 = vrot.slane %v1430, 1
        %v1433 = vsel %vm530, %v1428, %v1432
        %v1437 = vunpack.c.l.b16 %v1294
        %v1438 = vunpack.c.l.b16 %v1295
        %v1439 = vunpack.c.l.b16 %v1296
        %v1440 = vpack.c.b16 %v1438, %v1437
        %v1441 = vpack.c.b16 %v1439, %v1439
        %v1444 = vsel %vm338, %v1361, 0
        %v1447 = vsel %vm338, %v1369, 0
        %v1450 = vsel %vm338, %v1377, 0
        %v1453 = vsel %vm338, %v1385, 0
        %v1456 = vsel %vm338, %v1393, 0
        %v1459 = vsel %vm338, %v1401, 0
        %v1462 = vsel %vm338, %v1409, 0
        %v1465 = vsel %vm338, %v1417, 0
        %v1468 = vsel %vm338, %v1425, 0
        %v1471 = vsel %vm338, %v1433, 0
        %v1474 = vsel %vm369, %v1441, 0
        %1476 = vmatpush.bf16.msra.mxu0 0
        %1477 = vmatpush.bf16.msra.mxu0 0
        %1478 = vmatpush.bf16.msra.mxu0 0
        %1479 = vmatpush.bf16.msra.mxu0 0
        %1480 = vmatpush.bf16.msra.mxu0 0
        %1481 = vmatpush.bf16.msra.mxu0 0
        %1482 = vmatpush.bf16.msra.mxu0 %v1474
        %1483 = vmatpush.bf16.msra.mxu0 %v1440
        %1484 = vmatmul.bf16.gmra.mxu0 %v1444
        %v1485 = vpop.f32.mrf.mxu0
        %v1486 = vadd.f32 0.0, %v1485
        %v1487 = vpop.f32.mrf.mxu0
        %v1488 = vadd.f32 0.0, %v1487
        %1489 = vmatmul.bf16.gmra.mxu0 %v1447
        %v1490 = vpop.f32.mrf.mxu0
        %v1491 = vadd.f32 0.0, %v1490
        %v1492 = vpop.f32.mrf.mxu0
        %v1493 = vadd.f32 0.0, %v1492
        %1494 = vmatmul.bf16.gmra.mxu0 %v1450
        %v1495 = vpop.f32.mrf.mxu0
        %v1496 = vadd.f32 0.0, %v1495
        %v1497 = vpop.f32.mrf.mxu0
        %v1498 = vadd.f32 0.0, %v1497
        %1499 = vmatmul.bf16.gmra.mxu0 %v1453
        %v1500 = vpop.f32.mrf.mxu0
        %v1501 = vadd.f32 0.0, %v1500
        %v1502 = vpop.f32.mrf.mxu0
        %v1503 = vadd.f32 0.0, %v1502
        %1504 = vmatmul.bf16.gmra.mxu0 %v1456
        %v1505 = vpop.f32.mrf.mxu0
        %v1506 = vadd.f32 0.0, %v1505
        %v1507 = vpop.f32.mrf.mxu0
        %v1508 = vadd.f32 0.0, %v1507
        %1509 = vmatmul.bf16.gmra.mxu0 %v1459
        %v1510 = vpop.f32.mrf.mxu0
        %v1511 = vadd.f32 0.0, %v1510
        %v1512 = vpop.f32.mrf.mxu0
        %v1513 = vadd.f32 0.0, %v1512
        %1514 = vmatmul.bf16.gmra.mxu0 %v1462
        %v1515 = vpop.f32.mrf.mxu0
        %v1516 = vadd.f32 0.0, %v1515
        %v1517 = vpop.f32.mrf.mxu0
        %v1518 = vadd.f32 0.0, %v1517
        %1519 = vmatmul.bf16.gmra.mxu0 %v1465
        %v1520 = vpop.f32.mrf.mxu0
        %v1521 = vadd.f32 0.0, %v1520
        %v1522 = vpop.f32.mrf.mxu0
        %v1523 = vadd.f32 0.0, %v1522
        %1524 = vmatmul.bf16.gmra.mxu0 %v1468
        %v1525 = vpop.f32.mrf.mxu0
        %v1526 = vadd.f32 0.0, %v1525
        %v1527 = vpop.f32.mrf.mxu0
        %v1528 = vadd.f32 0.0, %v1527
        %1529 = vmatmul.bf16.gmra.mxu0 %v1471
        %v1530 = vpop.f32.mrf.mxu0
        %v1531 = vadd.f32 0.0, %v1530
        %v1532 = vpop.f32.mrf.mxu0
        %v1533 = vadd.f32 0.0, %v1532
        %1534 = vdwg.mxu0
        %v1535 = vld [vmem:[#allocation2] sm:$0xff]
        %v1536 = vld [vmem:[#allocation2 + $0x8] sm:$0xff]
        %v1537 = vld [vmem:[#allocation2 + $0x10] sm:$0xff]
        %v1538 = vld [vmem:[#allocation2 + $0x18] sm:$0xff]
        %v1539 = vld [vmem:[#allocation2 + $0x20] sm:$0xff]
        %v1540 = vld [vmem:[#allocation2 + $0x28] sm:$0xff]
        %v1541 = vld [vmem:[#allocation2 + $0x30] sm:$0xff]
        %v1542 = vld [vmem:[#allocation2 + $0x38] sm:$0xff]
        %v1543 = vld [vmem:[#allocation2 + $0x40] sm:$0xff]
        %v1544 = vld [vmem:[#allocation2 + $0x48] sm:$0xff]
        %v1545 = vld [vmem:[#allocation2 + $0x50] sm:$0xff]
        %v1546 = vld [vmem:[#allocation2 + $0x58] sm:$0xff]
        %v1547 = vld [vmem:[#allocation2 + $0x60] sm:$0xff]
        %v1548 = vld [vmem:[#allocation2 + $0x68] sm:$0xff]
        %v1549 = vld [vmem:[#allocation2 + $0x70] sm:$0xff]
        %v1550 = vld [vmem:[#allocation2 + $0x78] sm:$0xff]
        %v1551 = vld [vmem:[#allocation2 + $0x80] sm:$0xff]
        %v1552 = vld [vmem:[#allocation2 + $0x88] sm:$0xff]
        %v1553 = vld [vmem:[#allocation2 + $0x90] sm:$0xff]
        %v1554 = vld [vmem:[#allocation2 + $0x98] sm:$0xff]
        %v1555 = vadd.f32 %v1535, %v1486
        %v1556 = vadd.f32 %v1536, %v1488
        %v1557 = vadd.f32 %v1537, %v1491
        %v1558 = vadd.f32 %v1538, %v1493
        %v1559 = vadd.f32 %v1539, %v1496
        %v1560 = vadd.f32 %v1540, %v1498
        %v1561 = vadd.f32 %v1541, %v1501
        %v1562 = vadd.f32 %v1542, %v1503
        %v1563 = vadd.f32 %v1543, %v1506
        %v1564 = vadd.f32 %v1544, %v1508
        %v1565 = vadd.f32 %v1545, %v1511
        %v1566 = vadd.f32 %v1546, %v1513
        %v1567 = vadd.f32 %v1547, %v1516
        %v1568 = vadd.f32 %v1548, %v1518
        %v1569 = vadd.f32 %v1549, %v1521
        %v1570 = vadd.f32 %v1550, %v1523
        %v1571 = vadd.f32 %v1551, %v1526
        %v1572 = vadd.f32 %v1552, %v1528
        %v1573 = vadd.f32 %v1553, %v1531
        %v1574 = vadd.f32 %v1554, %v1533
        %1575 = vst [vmem:[#allocation2] sm:$0xff] %v1555
        %1576 = vst [vmem:[#allocation2 + $0x8] sm:$0xff] %v1556
        %1577 = vst [vmem:[#allocation2 + $0x10] sm:$0xff] %v1557
        %1578 = vst [vmem:[#allocation2 + $0x18] sm:$0xff] %v1558
        %1579 = vst [vmem:[#allocation2 + $0x20] sm:$0xff] %v1559
        %1580 = vst [vmem:[#allocation2 + $0x28] sm:$0xff] %v1560
        %1581 = vst [vmem:[#allocation2 + $0x30] sm:$0xff] %v1561
        %1582 = vst [vmem:[#allocation2 + $0x38] sm:$0xff] %v1562
        %1583 = vst [vmem:[#allocation2 + $0x40] sm:$0xff] %v1563
        %1584 = vst [vmem:[#allocation2 + $0x48] sm:$0xff] %v1564
        %1585 = vst [vmem:[#allocation2 + $0x50] sm:$0xff] %v1565
        %1586 = vst [vmem:[#allocation2 + $0x58] sm:$0xff] %v1566
        %1587 = vst [vmem:[#allocation2 + $0x60] sm:$0xff] %v1567
        %1588 = vst [vmem:[#allocation2 + $0x68] sm:$0xff] %v1568
        %1589 = vst [vmem:[#allocation2 + $0x70] sm:$0xff] %v1569
        %1590 = vst [vmem:[#allocation2 + $0x78] sm:$0xff] %v1570
        %1591 = vst [vmem:[#allocation2 + $0x80] sm:$0xff] %v1571
        %1592 = vst [vmem:[#allocation2 + $0x88] sm:$0xff] %v1572
        %1593 = vst [vmem:[#allocation2 + $0x90] sm:$0xff] %v1573
        %1594 = vst [vmem:[#allocation2 + $0x98] sm:$0xff] %v1574
        %v1595 = vld [vmem:[%s244 + $0x8] sm:$0xe]
        %v1596 = vld [vmem:[%s244 + $0xc] sm:$0xf]
        %v1597 = vld [vmem:[%s244 + $0x10] sm:$0xf]
        %v1598 = vld [vmem:[%s244 + $0x14] sm:$0xf]
        %v1599 = vld [vmem:[%s244 + $0x18] sm:$0xf]
        %v1600 = vld [vmem:[%s244 + $0x1c] sm:$0xf]
        %v1601 = vld [vmem:[%s244 + $0x20] sm:$0xf]
        %v1602 = vld [vmem:[%s244 + $0x24] sm:$0xf]
        %v1603 = vld [vmem:[%s244 + $0x28] sm:$0xf]
        %v1604 = vld [vmem:[%s244 + $0x2c] sm:$0xf]
        %v1605 = vld [vmem:[%s244 + $0x30] sm:$0xf]
        %v1606 = vld [vmem:[%s244 + $0x34] sm:$0xf]
        %v1607 = vld [vmem:[%s244 + $0x38] sm:$0xf]
        %v1608 = vld [vmem:[%s244 + $0x3c] sm:$0xf]
        %v1609 = vld [vmem:[%s244 + $0x40] sm:$0xf]
        %v1610 = vld [vmem:[%s244 + $0x44] sm:$0xf]
        %v1611 = vld [vmem:[%s244 + $0x48] sm:$0xf]
        %v1612 = vld [vmem:[%s244 + $0x4c] sm:$0xf]
        %v1613 = vld [vmem:[%s244 + $0x50] sm:$0xf]
        %v1614 = vld [vmem:[%s244 + $0x54] sm:$0xf]
        %v1615 = vld [vmem:[%s244 + $0x58] sm:$0x1]
        %s1616 = scalar_lea.vmem %s248, 60
        %v1617 = vld [vmem:[%s1616] sm:$0xf]
        %v1618 = vld [vmem:[%s1616 + $0x4] sm:$0xf]
        %v1619 = vld [vmem:[%s1616 + $0x8] sm:$0xf]
        %v1641 = vunpack.c.l.b16 %v1595
        %v1642 = vunpack.c.l.b16 %v1596
        %v1643 = vunpack.c.l.b16 %v1597
        %v1644 = vunpack.c.l.b16 %v1598
        %v1645 = vunpack.c.l.b16 %v1599
        %v1646 = vunpack.c.l.b16 %v1600
        %v1647 = vunpack.c.l.b16 %v1601
        %v1648 = vunpack.c.l.b16 %v1602
        %v1649 = vunpack.c.l.b16 %v1603
        %v1650 = vunpack.c.l.b16 %v1604
        %v1651 = vunpack.c.l.b16 %v1605
        %v1652 = vunpack.c.l.b16 %v1606
        %v1653 = vunpack.c.l.b16 %v1607
        %v1654 = vunpack.c.l.b16 %v1608
        %v1655 = vunpack.c.l.b16 %v1609
        %v1656 = vunpack.c.l.b16 %v1610
        %v1657 = vunpack.c.l.b16 %v1611
        %v1658 = vunpack.c.l.b16 %v1612
        %v1659 = vunpack.c.l.b16 %v1613
        %v1660 = vunpack.c.l.b16 %v1614
        %v1661 = vunpack.c.l.b16 %v1615
        %v1662 = vpack.c.b16 %v1642, %v1641
        %v1663 = vpack.c.b16 %v1644, %v1643
        %v1664 = vpack.c.b16 %v1646, %v1645
        %v1665 = vpack.c.b16 %v1648, %v1647
        %v1666 = vpack.c.b16 %v1650, %v1649
        %v1667 = vpack.c.b16 %v1652, %v1651
        %v1668 = vpack.c.b16 %v1654, %v1653
        %v1669 = vpack.c.b16 %v1656, %v1655
        %v1670 = vpack.c.b16 %v1658, %v1657
        %v1671 = vpack.c.b16 %v1660, %v1659
        %v1672 = vpack.c.b16 %v1661, %v1661
        %v1673 = vrot.slane %v1662, 1
        %v1674 = vrot.slane %v1663, 1
        %v1675 = vsel %vm854, %v1673, %v1674
        %v1676 = vrot.slane %v1664, 1
        %v1677 = vsel %vm854, %v1674, %v1676
        %v1678 = vrot.slane %v1665, 1
        %v1679 = vsel %vm854, %v1676, %v1678
        %v1680 = vrot.slane %v1666, 1
        %v1681 = vsel %vm854, %v1678, %v1680
        %v1682 = vrot.slane %v1667, 1
        %v1683 = vsel %vm854, %v1680, %v1682
        %v1684 = vrot.slane %v1668, 1
        %v1685 = vsel %vm854, %v1682, %v1684
        %v1686 = vrot.slane %v1669, 1
        %v1687 = vsel %vm854, %v1684, %v1686
        %v1688 = vrot.slane %v1670, 1
        %v1689 = vsel %vm854, %v1686, %v1688
        %v1690 = vrot.slane %v1671, 1
        %v1691 = vsel %vm854, %v1688, %v1690
        %v1692 = vrot.slane %v1672, 1
        %v1693 = vsel %vm854, %v1690, %v1692
        %v1697 = vunpack.c.l.b16 %v1617
        %v1698 = vunpack.c.l.b16 %v1618
        %v1699 = vunpack.c.l.b16 %v1619
        %v1700 = vpack.c.b16 %v1698, %v1697
        %v1701 = vpack.c.b16 %v1699, %v1699
        %v1704 = vsel %vm338, %v1675, 0
        %v1707 = vsel %vm338, %v1677, 0
        %v1710 = vsel %vm338, %v1679, 0
        %v1713 = vsel %vm338, %v1681, 0
        %v1716 = vsel %vm338, %v1683, 0
        %v1719 = vsel %vm338, %v1685, 0
        %v1722 = vsel %vm338, %v1687, 0
        %v1725 = vsel %vm338, %v1689, 0
        %v1728 = vsel %vm338, %v1691, 0
        %v1731 = vsel %vm338, %v1693, 0
        %v1734 = vsel %vm369, %v1701, 0
        %1736 = vmatpush.bf16.msra.mxu0 0
        %1737 = vmatpush.bf16.msra.mxu0 0
        %1738 = vmatpush.bf16.msra.mxu0 0
        %1739 = vmatpush.bf16.msra.mxu0 0
        %1740 = vmatpush.bf16.msra.mxu0 0
        %1741 = vmatpush.bf16.msra.mxu0 0
        %1742 = vmatpush.bf16.msra.mxu0 %v1734
        %1743 = vmatpush.bf16.msra.mxu0 %v1700
        %1744 = vmatmul.bf16.gmra.mxu0 %v1704
        %v1745 = vpop.f32.mrf.mxu0
        %v1746 = vadd.f32 0.0, %v1745
        %v1747 = vpop.f32.mrf.mxu0
        %v1748 = vadd.f32 0.0, %v1747
        %1749 = vmatmul.bf16.gmra.mxu0 %v1707
        %v1750 = vpop.f32.mrf.mxu0
        %v1751 = vadd.f32 0.0, %v1750
        %v1752 = vpop.f32.mrf.mxu0
        %v1753 = vadd.f32 0.0, %v1752
        %1754 = vmatmul.bf16.gmra.mxu0 %v1710
        %v1755 = vpop.f32.mrf.mxu0
        %v1756 = vadd.f32 0.0, %v1755
        %v1757 = vpop.f32.mrf.mxu0
        %v1758 = vadd.f32 0.0, %v1757
        %1759 = vmatmul.bf16.gmra.mxu0 %v1713
        %v1760 = vpop.f32.mrf.mxu0
        %v1761 = vadd.f32 0.0, %v1760
        %v1762 = vpop.f32.mrf.mxu0
        %v1763 = vadd.f32 0.0, %v1762
        %1764 = vmatmul.bf16.gmra.mxu0 %v1716
        %v1765 = vpop.f32.mrf.mxu0
        %v1766 = vadd.f32 0.0, %v1765
        %v1767 = vpop.f32.mrf.mxu0
        %v1768 = vadd.f32 0.0, %v1767
        %1769 = vmatmul.bf16.gmra.mxu0 %v1719
        %v1770 = vpop.f32.mrf.mxu0
        %v1771 = vadd.f32 0.0, %v1770
        %v1772 = vpop.f32.mrf.mxu0
        %v1773 = vadd.f32 0.0, %v1772
        %1774 = vmatmul.bf16.gmra.mxu0 %v1722
        %v1775 = vpop.f32.mrf.mxu0
        %v1776 = vadd.f32 0.0, %v1775
        %v1777 = vpop.f32.mrf.mxu0
        %v1778 = vadd.f32 0.0, %v1777
        %1779 = vmatmul.bf16.gmra.mxu0 %v1725
        %v1780 = vpop.f32.mrf.mxu0
        %v1781 = vadd.f32 0.0, %v1780
        %v1782 = vpop.f32.mrf.mxu0
        %v1783 = vadd.f32 0.0, %v1782
        %1784 = vmatmul.bf16.gmra.mxu0 %v1728
        %v1785 = vpop.f32.mrf.mxu0
        %v1786 = vadd.f32 0.0, %v1785
        %v1787 = vpop.f32.mrf.mxu0
        %v1788 = vadd.f32 0.0, %v1787
        %1789 = vmatmul.bf16.gmra.mxu0 %v1731
        %v1790 = vpop.f32.mrf.mxu0
        %v1791 = vadd.f32 0.0, %v1790
        %v1792 = vpop.f32.mrf.mxu0
        %v1793 = vadd.f32 0.0, %v1792
        %1794 = vdwg.mxu0
        %v1795 = vld [vmem:[#allocation2] sm:$0xff]
        %v1796 = vld [vmem:[#allocation2 + $0x8] sm:$0xff]
        %v1797 = vld [vmem:[#allocation2 + $0x10] sm:$0xff]
        %v1798 = vld [vmem:[#allocation2 + $0x18] sm:$0xff]
        %v1799 = vld [vmem:[#allocation2 + $0x20] sm:$0xff]
        %v1800 = vld [vmem:[#allocation2 + $0x28] sm:$0xff]
        %v1801 = vld [vmem:[#allocation2 + $0x30] sm:$0xff]
        %v1802 = vld [vmem:[#allocation2 + $0x38] sm:$0xff]
        %v1803 = vld [vmem:[#allocation2 + $0x40] sm:$0xff]
        %v1804 = vld [vmem:[#allocation2 + $0x48] sm:$0xff]
        %v1805 = vld [vmem:[#allocation2 + $0x50] sm:$0xff]
        %v1806 = vld [vmem:[#allocation2 + $0x58] sm:$0xff]
        %v1807 = vld [vmem:[#allocation2 + $0x60] sm:$0xff]
        %v1808 = vld [vmem:[#allocation2 + $0x68] sm:$0xff]
        %v1809 = vld [vmem:[#allocation2 + $0x70] sm:$0xff]
        %v1810 = vld [vmem:[#allocation2 + $0x78] sm:$0xff]
        %v1811 = vld [vmem:[#allocation2 + $0x80] sm:$0xff]
        %v1812 = vld [vmem:[#allocation2 + $0x88] sm:$0xff]
        %v1813 = vld [vmem:[#allocation2 + $0x90] sm:$0xff]
        %v1814 = vld [vmem:[#allocation2 + $0x98] sm:$0xff]
        %v1815 = vadd.f32 %v1795, %v1746
        %v1816 = vadd.f32 %v1796, %v1748
        %v1817 = vadd.f32 %v1797, %v1751
        %v1818 = vadd.f32 %v1798, %v1753
        %v1819 = vadd.f32 %v1799, %v1756
        %v1820 = vadd.f32 %v1800, %v1758
        %v1821 = vadd.f32 %v1801, %v1761
        %v1822 = vadd.f32 %v1802, %v1763
        %v1823 = vadd.f32 %v1803, %v1766
        %v1824 = vadd.f32 %v1804, %v1768
        %v1825 = vadd.f32 %v1805, %v1771
        %v1826 = vadd.f32 %v1806, %v1773
        %v1827 = vadd.f32 %v1807, %v1776
        %v1828 = vadd.f32 %v1808, %v1778
        %v1829 = vadd.f32 %v1809, %v1781
        %v1830 = vadd.f32 %v1810, %v1783
        %v1831 = vadd.f32 %v1811, %v1786
        %v1832 = vadd.f32 %v1812, %v1788
        %v1833 = vadd.f32 %v1813, %v1791
        %v1834 = vadd.f32 %v1814, %v1793
        %1835 = vst [vmem:[#allocation2] sm:$0xff] %v1815
        %1836 = vst [vmem:[#allocation2 + $0x8] sm:$0xff] %v1816
        %1837 = vst [vmem:[#allocation2 + $0x10] sm:$0xff] %v1817
        %1838 = vst [vmem:[#allocation2 + $0x18] sm:$0xff] %v1818
        %1839 = vst [vmem:[#allocation2 + $0x20] sm:$0xff] %v1819
        %1840 = vst [vmem:[#allocation2 + $0x28] sm:$0xff] %v1820
        %1841 = vst [vmem:[#allocation2 + $0x30] sm:$0xff] %v1821
        %1842 = vst [vmem:[#allocation2 + $0x38] sm:$0xff] %v1822
        %1843 = vst [vmem:[#allocation2 + $0x40] sm:$0xff] %v1823
        %1844 = vst [vmem:[#allocation2 + $0x48] sm:$0xff] %v1824
        %1845 = vst [vmem:[#allocation2 + $0x50] sm:$0xff] %v1825
        %1846 = vst [vmem:[#allocation2 + $0x58] sm:$0xff] %v1826
        %1847 = vst [vmem:[#allocation2 + $0x60] sm:$0xff] %v1827
        %1848 = vst [vmem:[#allocation2 + $0x68] sm:$0xff] %v1828
        %1849 = vst [vmem:[#allocation2 + $0x70] sm:$0xff] %v1829
        %1850 = vst [vmem:[#allocation2 + $0x78] sm:$0xff] %v1830
        %1851 = vst [vmem:[#allocation2 + $0x80] sm:$0xff] %v1831
        %1852 = vst [vmem:[#allocation2 + $0x88] sm:$0xff] %v1832
        %1853 = vst [vmem:[#allocation2 + $0x90] sm:$0xff] %v1833
        %1854 = vst [vmem:[#allocation2 + $0x98] sm:$0xff] %v1834
        %v1855 = vld [vmem:[%s244 + $0x10] sm:$0xf]
        %v1856 = vld [vmem:[%s244 + $0x14] sm:$0xf]
        %v1857 = vld [vmem:[%s244 + $0x18] sm:$0xf]
        %v1858 = vld [vmem:[%s244 + $0x1c] sm:$0xf]
        %v1859 = vld [vmem:[%s244 + $0x20] sm:$0xf]
        %v1860 = vld [vmem:[%s244 + $0x24] sm:$0xf]
        %v1861 = vld [vmem:[%s244 + $0x28] sm:$0xf]
        %v1862 = vld [vmem:[%s244 + $0x2c] sm:$0xf]
        %v1863 = vld [vmem:[%s244 + $0x30] sm:$0xf]
        %v1864 = vld [vmem:[%s244 + $0x34] sm:$0xf]
        %v1865 = vld [vmem:[%s244 + $0x38] sm:$0xf]
        %v1866 = vld [vmem:[%s244 + $0x3c] sm:$0xf]
        %v1867 = vld [vmem:[%s244 + $0x40] sm:$0xf]
        %v1868 = vld [vmem:[%s244 + $0x44] sm:$0xf]
        %v1869 = vld [vmem:[%s244 + $0x48] sm:$0xf]
        %v1870 = vld [vmem:[%s244 + $0x4c] sm:$0xf]
        %v1871 = vld [vmem:[%s244 + $0x50] sm:$0xf]
        %v1872 = vld [vmem:[%s244 + $0x54] sm:$0xf]
        %v1873 = vld [vmem:[%s244 + $0x58] sm:$0xf]
        %v1874 = vld [vmem:[%s244 + $0x5c] sm:$0xf]
        %s1875 = scalar_lea.vmem %s248, 72
        %v1876 = vld [vmem:[%s1875] sm:$0xf]
        %v1877 = vld [vmem:[%s1875 + $0x4] sm:$0xf]
        %v1878 = vld [vmem:[%s1875 + $0x8] sm:$0xf]
        %v1899 = vunpack.c.l.b16 %v1855
        %v1900 = vunpack.c.l.b16 %v1856
        %v1901 = vunpack.c.l.b16 %v1857
        %v1902 = vunpack.c.l.b16 %v1858
        %v1903 = vunpack.c.l.b16 %v1859
        %v1904 = vunpack.c.l.b16 %v1860
        %v1905 = vunpack.c.l.b16 %v1861
        %v1906 = vunpack.c.l.b16 %v1862
        %v1907 = vunpack.c.l.b16 %v1863
        %v1908 = vunpack.c.l.b16 %v1864
        %v1909 = vunpack.c.l.b16 %v1865
        %v1910 = vunpack.c.l.b16 %v1866
        %v1911 = vunpack.c.l.b16 %v1867
        %v1912 = vunpack.c.l.b16 %v1868
        %v1913 = vunpack.c.l.b16 %v1869
        %v1914 = vunpack.c.l.b16 %v1870
        %v1915 = vunpack.c.l.b16 %v1871
        %v1916 = vunpack.c.l.b16 %v1872
        %v1917 = vunpack.c.l.b16 %v1873
        %v1918 = vunpack.c.l.b16 %v1874
        %v1919 = vpack.c.b16 %v1900, %v1899
        %v1920 = vpack.c.b16 %v1902, %v1901
        %v1921 = vpack.c.b16 %v1904, %v1903
        %v1922 = vpack.c.b16 %v1906, %v1905
        %v1923 = vpack.c.b16 %v1908, %v1907
        %v1924 = vpack.c.b16 %v1910, %v1909
        %v1925 = vpack.c.b16 %v1912, %v1911
        %v1926 = vpack.c.b16 %v1914, %v1913
        %v1927 = vpack.c.b16 %v1916, %v1915
        %v1928 = vpack.c.b16 %v1918, %v1917
        %v1932 = vunpack.c.l.b16 %v1876
        %v1933 = vunpack.c.l.b16 %v1877
        %v1934 = vunpack.c.l.b16 %v1878
        %v1935 = vpack.c.b16 %v1933, %v1932
        %v1936 = vpack.c.b16 %v1934, %v1934
        %v1939 = vsel %vm338, %v1919, 0
        %v1942 = vsel %vm338, %v1920, 0
        %v1945 = vsel %vm338, %v1921, 0
        %v1948 = vsel %vm338, %v1922, 0
        %v1951 = vsel %vm338, %v1923, 0
        %v1954 = vsel %vm338, %v1924, 0
        %v1957 = vsel %vm338, %v1925, 0
        %v1960 = vsel %vm338, %v1926, 0
        %v1963 = vsel %vm338, %v1927, 0
        %v1966 = vsel %vm338, %v1928, 0
        %v1969 = vsel %vm369, %v1936, 0
        %1971 = vmatpush.bf16.msra.mxu0 0
        %1972 = vmatpush.bf16.msra.mxu0 0
        %1973 = vmatpush.bf16.msra.mxu0 0
        %1974 = vmatpush.bf16.msra.mxu0 0
        %1975 = vmatpush.bf16.msra.mxu0 0
        %1976 = vmatpush.bf16.msra.mxu0 0
        %1977 = vmatpush.bf16.msra.mxu0 %v1969
        %1978 = vmatpush.bf16.msra.mxu0 %v1935
        %1979 = vmatmul.bf16.gmra.mxu0 %v1939
        %v1980 = vpop.f32.mrf.mxu0
        %v1981 = vadd.f32 0.0, %v1980
        %v1982 = vpop.f32.mrf.mxu0
        %v1983 = vadd.f32 0.0, %v1982
        %1984 = vmatmul.bf16.gmra.mxu0 %v1942
        %v1985 = vpop.f32.mrf.mxu0
        %v1986 = vadd.f32 0.0, %v1985
        %v1987 = vpop.f32.mrf.mxu0
        %v1988 = vadd.f32 0.0, %v1987
        %1989 = vmatmul.bf16.gmra.mxu0 %v1945
        %v1990 = vpop.f32.mrf.mxu0
        %v1991 = vadd.f32 0.0, %v1990
        %v1992 = vpop.f32.mrf.mxu0
        %v1993 = vadd.f32 0.0, %v1992
        %1994 = vmatmul.bf16.gmra.mxu0 %v1948
        %v1995 = vpop.f32.mrf.mxu0
        %v1996 = vadd.f32 0.0, %v1995
        %v1997 = vpop.f32.mrf.mxu0
        %v1998 = vadd.f32 0.0, %v1997
        %1999 = vmatmul.bf16.gmra.mxu0 %v1951
        %v2000 = vpop.f32.mrf.mxu0
        %v2001 = vadd.f32 0.0, %v2000
        %v2002 = vpop.f32.mrf.mxu0
        %v2003 = vadd.f32 0.0, %v2002
        %2004 = vmatmul.bf16.gmra.mxu0 %v1954
        %v2005 = vpop.f32.mrf.mxu0
        %v2006 = vadd.f32 0.0, %v2005
        %v2007 = vpop.f32.mrf.mxu0
        %v2008 = vadd.f32 0.0, %v2007
        %2009 = vmatmul.bf16.gmra.mxu0 %v1957
        %v2010 = vpop.f32.mrf.mxu0
        %v2011 = vadd.f32 0.0, %v2010
        %v2012 = vpop.f32.mrf.mxu0
        %v2013 = vadd.f32 0.0, %v2012
        %2014 = vmatmul.bf16.gmra.mxu0 %v1960
        %v2015 = vpop.f32.mrf.mxu0
        %v2016 = vadd.f32 0.0, %v2015
        %v2017 = vpop.f32.mrf.mxu0
        %v2018 = vadd.f32 0.0, %v2017
        %2019 = vmatmul.bf16.gmra.mxu0 %v1963
        %v2020 = vpop.f32.mrf.mxu0
        %v2021 = vadd.f32 0.0, %v2020
        %v2022 = vpop.f32.mrf.mxu0
        %v2023 = vadd.f32 0.0, %v2022
        %2024 = vmatmul.bf16.gmra.mxu0 %v1966
        %v2025 = vpop.f32.mrf.mxu0
        %v2026 = vadd.f32 0.0, %v2025
        %v2027 = vpop.f32.mrf.mxu0
        %v2028 = vadd.f32 0.0, %v2027
        %2029 = vdwg.mxu0
        %v2030 = vld [vmem:[#allocation2] sm:$0xff]
        %v2031 = vld [vmem:[#allocation2 + $0x8] sm:$0xff]
        %v2032 = vld [vmem:[#allocation2 + $0x10] sm:$0xff]
        %v2033 = vld [vmem:[#allocation2 + $0x18] sm:$0xff]
        %v2034 = vld [vmem:[#allocation2 + $0x20] sm:$0xff]
        %v2035 = vld [vmem:[#allocation2 + $0x28] sm:$0xff]
        %v2036 = vld [vmem:[#allocation2 + $0x30] sm:$0xff]
        %v2037 = vld [vmem:[#allocation2 + $0x38] sm:$0xff]
        %v2038 = vld [vmem:[#allocation2 + $0x40] sm:$0xff]
        %v2039 = vld [vmem:[#allocation2 + $0x48] sm:$0xff]
        %v2040 = vld [vmem:[#allocation2 + $0x50] sm:$0xff]
        %v2041 = vld [vmem:[#allocation2 + $0x58] sm:$0xff]
        %v2042 = vld [vmem:[#allocation2 + $0x60] sm:$0xff]
        %v2043 = vld [vmem:[#allocation2 + $0x68] sm:$0xff]
        %v2044 = vld [vmem:[#allocation2 + $0x70] sm:$0xff]
        %v2045 = vld [vmem:[#allocation2 + $0x78] sm:$0xff]
        %v2046 = vld [vmem:[#allocation2 + $0x80] sm:$0xff]
        %v2047 = vld [vmem:[#allocation2 + $0x88] sm:$0xff]
        %v2048 = vld [vmem:[#allocation2 + $0x90] sm:$0xff]
        %v2049 = vld [vmem:[#allocation2 + $0x98] sm:$0xff]
        %v2050 = vadd.f32 %v2030, %v1981
        %v2051 = vadd.f32 %v2031, %v1983
        %v2052 = vadd.f32 %v2032, %v1986
        %v2053 = vadd.f32 %v2033, %v1988
        %v2054 = vadd.f32 %v2034, %v1991
        %v2055 = vadd.f32 %v2035, %v1993
        %v2056 = vadd.f32 %v2036, %v1996
        %v2057 = vadd.f32 %v2037, %v1998
        %v2058 = vadd.f32 %v2038, %v2001
        %v2059 = vadd.f32 %v2039, %v2003
        %v2060 = vadd.f32 %v2040, %v2006
        %v2061 = vadd.f32 %v2041, %v2008
        %v2062 = vadd.f32 %v2042, %v2011
        %v2063 = vadd.f32 %v2043, %v2013
        %v2064 = vadd.f32 %v2044, %v2016
        %v2065 = vadd.f32 %v2045, %v2018
        %v2066 = vadd.f32 %v2046, %v2021
        %v2067 = vadd.f32 %v2047, %v2023
        %v2068 = vadd.f32 %v2048, %v2026
        %v2069 = vadd.f32 %v2049, %v2028
        %2070 = vst [vmem:[#allocation2] sm:$0xff] %v2050
        %2071 = vst [vmem:[#allocation2 + $0x8] sm:$0xff] %v2051
        %2072 = vst [vmem:[#allocation2 + $0x10] sm:$0xff] %v2052
        %2073 = vst [vmem:[#allocation2 + $0x18] sm:$0xff] %v2053
        %2074 = vst [vmem:[#allocation2 + $0x20] sm:$0xff] %v2054
        %2075 = vst [vmem:[#allocation2 + $0x28] sm:$0xff] %v2055
        %2076 = vst [vmem:[#allocation2 + $0x30] sm:$0xff] %v2056
        %2077 = vst [vmem:[#allocation2 + $0x38] sm:$0xff] %v2057
        %2078 = vst [vmem:[#allocation2 + $0x40] sm:$0xff] %v2058
        %2079 = vst [vmem:[#allocation2 + $0x48] sm:$0xff] %v2059
        %2080 = vst [vmem:[#allocation2 + $0x50] sm:$0xff] %v2060
        %2081 = vst [vmem:[#allocation2 + $0x58] sm:$0xff] %v2061
        %2082 = vst [vmem:[#allocation2 + $0x60] sm:$0xff] %v2062
        %2083 = vst [vmem:[#allocation2 + $0x68] sm:$0xff] %v2063
        %2084 = vst [vmem:[#allocation2 + $0x70] sm:$0xff] %v2064
        %2085 = vst [vmem:[#allocation2 + $0x78] sm:$0xff] %v2065
        %2086 = vst [vmem:[#allocation2 + $0x80] sm:$0xff] %v2066
        %2087 = vst [vmem:[#allocation2 + $0x88] sm:$0xff] %v2067
        %2088 = vst [vmem:[#allocation2 + $0x90] sm:$0xff] %v2068
        %2089 = vst [vmem:[#allocation2 + $0x98] sm:$0xff] %v2069
        %v2090 = vld [vmem:[%s244 + $0x10] sm:$0xf]
        %v2091 = vld [vmem:[%s244 + $0x14] sm:$0xf]
        %v2092 = vld [vmem:[%s244 + $0x18] sm:$0xf]
        %v2093 = vld [vmem:[%s244 + $0x1c] sm:$0xf]
        %v2094 = vld [vmem:[%s244 + $0x20] sm:$0xf]
        %v2095 = vld [vmem:[%s244 + $0x24] sm:$0xf]
        %v2096 = vld [vmem:[%s244 + $0x28] sm:$0xf]
        %v2097 = vld [vmem:[%s244 + $0x2c] sm:$0xf]
        %v2098 = vld [vmem:[%s244 + $0x30] sm:$0xf]
        %v2099 = vld [vmem:[%s244 + $0x34] sm:$0xf]
        %v2100 = vld [vmem:[%s244 + $0x38] sm:$0xf]
        %v2101 = vld [vmem:[%s244 + $0x3c] sm:$0xf]
        %v2102 = vld [vmem:[%s244 + $0x40] sm:$0xf]
        %v2103 = vld [vmem:[%s244 + $0x44] sm:$0xf]
        %v2104 = vld [vmem:[%s244 + $0x48] sm:$0xf]
        %v2105 = vld [vmem:[%s244 + $0x4c] sm:$0xf]
        %v2106 = vld [vmem:[%s244 + $0x50] sm:$0xf]
        %v2107 = vld [vmem:[%s244 + $0x54] sm:$0xf]
        %v2108 = vld [vmem:[%s244 + $0x58] sm:$0xf]
        %v2109 = vld [vmem:[%s244 + $0x5c] sm:$0xf]
        %v2110 = vld [vmem:[%s244 + $0x60] sm:$0x1]
        %s2111 = scalar_lea.vmem %s248, 84
        %v2112 = vld [vmem:[%s2111] sm:$0xf]
        %v2113 = vld [vmem:[%s2111 + $0x4] sm:$0xf]
        %v2114 = vld [vmem:[%s2111 + $0x8] sm:$0xf]
        %v2136 = vunpack.c.l.b16 %v2090
        %v2137 = vunpack.c.l.b16 %v2091
        %v2138 = vunpack.c.l.b16 %v2092
        %v2139 = vunpack.c.l.b16 %v2093
        %v2140 = vunpack.c.l.b16 %v2094
        %v2141 = vunpack.c.l.b16 %v2095
        %v2142 = vunpack.c.l.b16 %v2096
        %v2143 = vunpack.c.l.b16 %v2097
        %v2144 = vunpack.c.l.b16 %v2098
        %v2145 = vunpack.c.l.b16 %v2099
        %v2146 = vunpack.c.l.b16 %v2100
        %v2147 = vunpack.c.l.b16 %v2101
        %v2148 = vunpack.c.l.b16 %v2102
        %v2149 = vunpack.c.l.b16 %v2103
        %v2150 = vunpack.c.l.b16 %v2104
        %v2151 = vunpack.c.l.b16 %v2105
        %v2152 = vunpack.c.l.b16 %v2106
        %v2153 = vunpack.c.l.b16 %v2107
        %v2154 = vunpack.c.l.b16 %v2108
        %v2155 = vunpack.c.l.b16 %v2109
        %v2156 = vunpack.c.l.b16 %v2110
        %v2157 = vpack.c.b16 %v2137, %v2136
        %v2158 = vpack.c.b16 %v2139, %v2138
        %v2159 = vpack.c.b16 %v2141, %v2140
        %v2160 = vpack.c.b16 %v2143, %v2142
        %v2161 = vpack.c.b16 %v2145, %v2144
        %v2162 = vpack.c.b16 %v2147, %v2146
        %v2163 = vpack.c.b16 %v2149, %v2148
        %v2164 = vpack.c.b16 %v2151, %v2150
        %v2165 = vpack.c.b16 %v2153, %v2152
        %v2166 = vpack.c.b16 %v2155, %v2154
        %v2167 = vpack.c.b16 %v2156, %v2156
        %v2169 = vshrl.u32 %v2157, 16
        %v2171 = vshll.u32 %v2157, 16
        %v2173 = vrot.slane %v2171, 1
        %v2174 = vor.u32 %v2169, %v2173
        %v2176 = vshll.u32 %v2158, 16
        %v2178 = vrot.slane %v2176, 1
        %v2179 = vsel %vm530, %v2174, %v2178
        %v2180 = vshrl.u32 %v2158, 16
        %v2182 = vor.u32 %v2180, %v2178
        %v2184 = vshll.u32 %v2159, 16
        %v2186 = vrot.slane %v2184, 1
        %v2187 = vsel %vm530, %v2182, %v2186
        %v2188 = vshrl.u32 %v2159, 16
        %v2190 = vor.u32 %v2188, %v2186
        %v2192 = vshll.u32 %v2160, 16
        %v2194 = vrot.slane %v2192, 1
        %v2195 = vsel %vm530, %v2190, %v2194
        %v2196 = vshrl.u32 %v2160, 16
        %v2198 = vor.u32 %v2196, %v2194
        %v2200 = vshll.u32 %v2161, 16
        %v2202 = vrot.slane %v2200, 1
        %v2203 = vsel %vm530, %v2198, %v2202
        %v2204 = vshrl.u32 %v2161, 16
        %v2206 = vor.u32 %v2204, %v2202
        %v2208 = vshll.u32 %v2162, 16
        %v2210 = vrot.slane %v2208, 1
        %v2211 = vsel %vm530, %v2206, %v2210
        %v2212 = vshrl.u32 %v2162, 16
        %v2214 = vor.u32 %v2212, %v2210
        %v2216 = vshll.u32 %v2163, 16
        %v2218 = vrot.slane %v2216, 1
        %v2219 = vsel %vm530, %v2214, %v2218
        %v2220 = vshrl.u32 %v2163, 16
        %v2222 = vor.u32 %v2220, %v2218
        %v2224 = vshll.u32 %v2164, 16
        %v2226 = vrot.slane %v2224, 1
        %v2227 = vsel %vm530, %v2222, %v2226
        %v2228 = vshrl.u32 %v2164, 16
        %v2230 = vor.u32 %v2228, %v2226
        %v2232 = vshll.u32 %v2165, 16
        %v2234 = vrot.slane %v2232, 1
        %v2235 = vsel %vm530, %v2230, %v2234
        %v2236 = vshrl.u32 %v2165, 16
        %v2238 = vor.u32 %v2236, %v2234
        %v2240 = vshll.u32 %v2166, 16
        %v2242 = vrot.slane %v2240, 1
        %v2243 = vsel %vm530, %v2238, %v2242
        %v2244 = vshrl.u32 %v2166, 16
        %v2246 = vor.u32 %v2244, %v2242
        %v2248 = vshll.u32 %v2167, 16
        %v2250 = vrot.slane %v2248, 1
        %v2251 = vsel %vm530, %v2246, %v2250
        %v2255 = vunpack.c.l.b16 %v2112
        %v2256 = vunpack.c.l.b16 %v2113
        %v2257 = vunpack.c.l.b16 %v2114
        %v2258 = vpack.c.b16 %v2256, %v2255
        %v2259 = vpack.c.b16 %v2257, %v2257
        %v2262 = vsel %vm338, %v2179, 0
        %v2265 = vsel %vm338, %v2187, 0
        %v2268 = vsel %vm338, %v2195, 0
        %v2271 = vsel %vm338, %v2203, 0
        %v2274 = vsel %vm338, %v2211, 0
        %v2277 = vsel %vm338, %v2219, 0
        %v2280 = vsel %vm338, %v2227, 0
        %v2283 = vsel %vm338, %v2235, 0
        %v2286 = vsel %vm338, %v2243, 0
        %v2289 = vsel %vm338, %v2251, 0
        %v2292 = vsel %vm369, %v2259, 0
        %2294 = vmatpush.bf16.msra.mxu0 0
        %2295 = vmatpush.bf16.msra.mxu0 0
        %2296 = vmatpush.bf16.msra.mxu0 0
        %2297 = vmatpush.bf16.msra.mxu0 0
        %2298 = vmatpush.bf16.msra.mxu0 0
        %2299 = vmatpush.bf16.msra.mxu0 0
        %2300 = vmatpush.bf16.msra.mxu0 %v2292
        %2301 = vmatpush.bf16.msra.mxu0 %v2258
        %2302 = vmatmul.bf16.gmra.mxu0 %v2262
        %v2303 = vpop.f32.mrf.mxu0
        %v2304 = vadd.f32 0.0, %v2303
        %v2305 = vpop.f32.mrf.mxu0
        %v2306 = vadd.f32 0.0, %v2305
        %2307 = vmatmul.bf16.gmra.mxu0 %v2265
        %v2308 = vpop.f32.mrf.mxu0
        %v2309 = vadd.f32 0.0, %v2308
        %v2310 = vpop.f32.mrf.mxu0
        %v2311 = vadd.f32 0.0, %v2310
        %2312 = vmatmul.bf16.gmra.mxu0 %v2268
        %v2313 = vpop.f32.mrf.mxu0
        %v2314 = vadd.f32 0.0, %v2313
        %v2315 = vpop.f32.mrf.mxu0
        %v2316 = vadd.f32 0.0, %v2315
        %2317 = vmatmul.bf16.gmra.mxu0 %v2271
        %v2318 = vpop.f32.mrf.mxu0
        %v2319 = vadd.f32 0.0, %v2318
        %v2320 = vpop.f32.mrf.mxu0
        %v2321 = vadd.f32 0.0, %v2320
        %2322 = vmatmul.bf16.gmra.mxu0 %v2274
        %v2323 = vpop.f32.mrf.mxu0
        %v2324 = vadd.f32 0.0, %v2323
        %v2325 = vpop.f32.mrf.mxu0
        %v2326 = vadd.f32 0.0, %v2325
        %2327 = vmatmul.bf16.gmra.mxu0 %v2277
        %v2328 = vpop.f32.mrf.mxu0
        %v2329 = vadd.f32 0.0, %v2328
        %v2330 = vpop.f32.mrf.mxu0
        %v2331 = vadd.f32 0.0, %v2330
        %2332 = vmatmul.bf16.gmra.mxu0 %v2280
        %v2333 = vpop.f32.mrf.mxu0
        %v2334 = vadd.f32 0.0, %v2333
        %v2335 = vpop.f32.mrf.mxu0
        %v2336 = vadd.f32 0.0, %v2335
        %2337 = vmatmul.bf16.gmra.mxu0 %v2283
        %v2338 = vpop.f32.mrf.mxu0
        %v2339 = vadd.f32 0.0, %v2338
        %v2340 = vpop.f32.mrf.mxu0
        %v2341 = vadd.f32 0.0, %v2340
        %2342 = vmatmul.bf16.gmra.mxu0 %v2286
        %v2343 = vpop.f32.mrf.mxu0
        %v2344 = vadd.f32 0.0, %v2343
        %v2345 = vpop.f32.mrf.mxu0
        %v2346 = vadd.f32 0.0, %v2345
        %2347 = vmatmul.bf16.gmra.mxu0 %v2289
        %v2348 = vpop.f32.mrf.mxu0
        %v2349 = vadd.f32 0.0, %v2348
        %v2350 = vpop.f32.mrf.mxu0
        %v2351 = vadd.f32 0.0, %v2350
        %2352 = vdwg.mxu0
        %v2353 = vld [vmem:[#allocation2] sm:$0xff]
        %v2354 = vld [vmem:[#allocation2 + $0x8] sm:$0xff]
        %v2355 = vld [vmem:[#allocation2 + $0x10] sm:$0xff]
        %v2356 = vld [vmem:[#allocation2 + $0x18] sm:$0xff]
        %v2357 = vld [vmem:[#allocation2 + $0x20] sm:$0xff]
        %v2358 = vld [vmem:[#allocation2 + $0x28] sm:$0xff]
        %v2359 = vld [vmem:[#allocation2 + $0x30] sm:$0xff]
        %v2360 = vld [vmem:[#allocation2 + $0x38] sm:$0xff]
        %v2361 = vld [vmem:[#allocation2 + $0x40] sm:$0xff]
        %v2362 = vld [vmem:[#allocation2 + $0x48] sm:$0xff]
        %v2363 = vld [vmem:[#allocation2 + $0x50] sm:$0xff]
        %v2364 = vld [vmem:[#allocation2 + $0x58] sm:$0xff]
        %v2365 = vld [vmem:[#allocation2 + $0x60] sm:$0xff]
        %v2366 = vld [vmem:[#allocation2 + $0x68] sm:$0xff]
        %v2367 = vld [vmem:[#allocation2 + $0x70] sm:$0xff]
        %v2368 = vld [vmem:[#allocation2 + $0x78] sm:$0xff]
        %v2369 = vld [vmem:[#allocation2 + $0x80] sm:$0xff]
        %v2370 = vld [vmem:[#allocation2 + $0x88] sm:$0xff]
        %v2371 = vld [vmem:[#allocation2 + $0x90] sm:$0xff]
        %v2372 = vld [vmem:[#allocation2 + $0x98] sm:$0xff]
        %v2373 = vadd.f32 %v2353, %v2304
        %v2374 = vadd.f32 %v2354, %v2306
        %v2375 = vadd.f32 %v2355, %v2309
        %v2376 = vadd.f32 %v2356, %v2311
        %v2377 = vadd.f32 %v2357, %v2314
        %v2378 = vadd.f32 %v2358, %v2316
        %v2379 = vadd.f32 %v2359, %v2319
        %v2380 = vadd.f32 %v2360, %v2321
        %v2381 = vadd.f32 %v2361, %v2324
        %v2382 = vadd.f32 %v2362, %v2326
        %v2383 = vadd.f32 %v2363, %v2329
        %v2384 = vadd.f32 %v2364, %v2331
        %v2385 = vadd.f32 %v2365, %v2334
        %v2386 = vadd.f32 %v2366, %v2336
        %v2387 = vadd.f32 %v2367, %v2339
        %v2388 = vadd.f32 %v2368, %v2341
        %v2389 = vadd.f32 %v2369, %v2344
        %v2390 = vadd.f32 %v2370, %v2346
        %v2391 = vadd.f32 %v2371, %v2349
        %v2392 = vadd.f32 %v2372, %v2351
        %2393 = vst [vmem:[#allocation2] sm:$0xff] %v2373
        %2394 = vst [vmem:[#allocation2 + $0x8] sm:$0xff] %v2374
        %2395 = vst [vmem:[#allocation2 + $0x10] sm:$0xff] %v2375
        %2396 = vst [vmem:[#allocation2 + $0x18] sm:$0xff] %v2376
        %2397 = vst [vmem:[#allocation2 + $0x20] sm:$0xff] %v2377
        %2398 = vst [vmem:[#allocation2 + $0x28] sm:$0xff] %v2378
        %2399 = vst [vmem:[#allocation2 + $0x30] sm:$0xff] %v2379
        %2400 = vst [vmem:[#allocation2 + $0x38] sm:$0xff] %v2380
        %2401 = vst [vmem:[#allocation2 + $0x40] sm:$0xff] %v2381
        %2402 = vst [vmem:[#allocation2 + $0x48] sm:$0xff] %v2382
        %2403 = vst [vmem:[#allocation2 + $0x50] sm:$0xff] %v2383
        %2404 = vst [vmem:[#allocation2 + $0x58] sm:$0xff] %v2384
        %2405 = vst [vmem:[#allocation2 + $0x60] sm:$0xff] %v2385
        %2406 = vst [vmem:[#allocation2 + $0x68] sm:$0xff] %v2386
        %2407 = vst [vmem:[#allocation2 + $0x70] sm:$0xff] %v2387
        %2408 = vst [vmem:[#allocation2 + $0x78] sm:$0xff] %v2388
        %2409 = vst [vmem:[#allocation2 + $0x80] sm:$0xff] %v2389
        %2410 = vst [vmem:[#allocation2 + $0x88] sm:$0xff] %v2390
        %2411 = vst [vmem:[#allocation2 + $0x90] sm:$0xff] %v2391
        %2412 = vst [vmem:[#allocation2 + $0x98] sm:$0xff] %v2392
        %v2413 = vld [vmem:[%s244 + $0x10] sm:$0xe]
        %v2414 = vld [vmem:[%s244 + $0x14] sm:$0xf]
        %v2415 = vld [vmem:[%s244 + $0x18] sm:$0xf]
        %v2416 = vld [vmem:[%s244 + $0x1c] sm:$0xf]
        %v2417 = vld [vmem:[%s244 + $0x20] sm:$0xf]
        %v2418 = vld [vmem:[%s244 + $0x24] sm:$0xf]
        %v2419 = vld [vmem:[%s244 + $0x28] sm:$0xf]
        %v2420 = vld [vmem:[%s244 + $0x2c] sm:$0xf]
        %v2421 = vld [vmem:[%s244 + $0x30] sm:$0xf]
        %v2422 = vld [vmem:[%s244 + $0x34] sm:$0xf]
        %v2423 = vld [vmem:[%s244 + $0x38] sm:$0xf]
        %v2424 = vld [vmem:[%s244 + $0x3c] sm:$0xf]
        %v2425 = vld [vmem:[%s244 + $0x40] sm:$0xf]
        %v2426 = vld [vmem:[%s244 + $0x44] sm:$0xf]
        %v2427 = vld [vmem:[%s244 + $0x48] sm:$0xf]
        %v2428 = vld [vmem:[%s244 + $0x4c] sm:$0xf]
        %v2429 = vld [vmem:[%s244 + $0x50] sm:$0xf]
        %v2430 = vld [vmem:[%s244 + $0x54] sm:$0xf]
        %v2431 = vld [vmem:[%s244 + $0x58] sm:$0xf]
        %v2432 = vld [vmem:[%s244 + $0x5c] sm:$0xf]
        %v2433 = vld [vmem:[%s244 + $0x60] sm:$0x1]
        %s2434 = scalar_lea.vmem %s248, 96
        %v2435 = vld [vmem:[%s2434] sm:$0xf]
        %v2436 = vld [vmem:[%s2434 + $0x4] sm:$0xf]
        %v2437 = vld [vmem:[%s2434 + $0x8] sm:$0xf]
        %v2459 = vunpack.c.l.b16 %v2413
        %v2460 = vunpack.c.l.b16 %v2414
        %v2461 = vunpack.c.l.b16 %v2415
        %v2462 = vunpack.c.l.b16 %v2416
        %v2463 = vunpack.c.l.b16 %v2417
        %v2464 = vunpack.c.l.b16 %v2418
        %v2465 = vunpack.c.l.b16 %v2419
        %v2466 = vunpack.c.l.b16 %v2420
        %v2467 = vunpack.c.l.b16 %v2421
        %v2468 = vunpack.c.l.b16 %v2422
        %v2469 = vunpack.c.l.b16 %v2423
        %v2470 = vunpack.c.l.b16 %v2424
        %v2471 = vunpack.c.l.b16 %v2425
        %v2472 = vunpack.c.l.b16 %v2426
        %v2473 = vunpack.c.l.b16 %v2427
        %v2474 = vunpack.c.l.b16 %v2428
        %v2475 = vunpack.c.l.b16 %v2429
        %v2476 = vunpack.c.l.b16 %v2430
        %v2477 = vunpack.c.l.b16 %v2431
        %v2478 = vunpack.c.l.b16 %v2432
        %v2479 = vunpack.c.l.b16 %v2433
        %v2480 = vpack.c.b16 %v2460, %v2459
        %v2481 = vpack.c.b16 %v2462, %v2461
        %v2482 = vpack.c.b16 %v2464, %v2463
        %v2483 = vpack.c.b16 %v2466, %v2465
        %v2484 = vpack.c.b16 %v2468, %v2467
        %v2485 = vpack.c.b16 %v2470, %v2469
        %v2486 = vpack.c.b16 %v2472, %v2471
        %v2487 = vpack.c.b16 %v2474, %v2473
        %v2488 = vpack.c.b16 %v2476, %v2475
        %v2489 = vpack.c.b16 %v2478, %v2477
        %v2490 = vpack.c.b16 %v2479, %v2479
        %v2491 = vrot.slane %v2480, 1
        %v2492 = vrot.slane %v2481, 1
        %v2493 = vsel %vm854, %v2491, %v2492
        %v2494 = vrot.slane %v2482, 1
        %v2495 = vsel %vm854, %v2492, %v2494
        %v2496 = vrot.slane %v2483, 1
        %v2497 = vsel %vm854, %v2494, %v2496
        %v2498 = vrot.slane %v2484, 1
        %v2499 = vsel %vm854, %v2496, %v2498
        %v2500 = vrot.slane %v2485, 1
        %v2501 = vsel %vm854, %v2498, %v2500
        %v2502 = vrot.slane %v2486, 1
        %v2503 = vsel %vm854, %v2500, %v2502
        %v2504 = vrot.slane %v2487, 1
        %v2505 = vsel %vm854, %v2502, %v2504
        %v2506 = vrot.slane %v2488, 1
        %v2507 = vsel %vm854, %v2504, %v2506
        %v2508 = vrot.slane %v2489, 1
        %v2509 = vsel %vm854, %v2506, %v2508
        %v2510 = vrot.slane %v2490, 1
        %v2511 = vsel %vm854, %v2508, %v2510
        %v2515 = vunpack.c.l.b16 %v2435
        %v2516 = vunpack.c.l.b16 %v2436
        %v2517 = vunpack.c.l.b16 %v2437
        %v2518 = vpack.c.b16 %v2516, %v2515
        %v2519 = vpack.c.b16 %v2517, %v2517
        %v2522 = vsel %vm338, %v2493, 0
        %v2525 = vsel %vm338, %v2495, 0
        %v2528 = vsel %vm338, %v2497, 0
        %v2531 = vsel %vm338, %v2499, 0
        %v2534 = vsel %vm338, %v2501, 0
        %v2537 = vsel %vm338, %v2503, 0
        %v2540 = vsel %vm338, %v2505, 0
        %v2543 = vsel %vm338, %v2507, 0
        %v2546 = vsel %vm338, %v2509, 0
        %v2549 = vsel %vm338, %v2511, 0
        %v2552 = vsel %vm369, %v2519, 0
        %2554 = vmatpush.bf16.msra.mxu0 0
        %2555 = vmatpush.bf16.msra.mxu0 0
        %2556 = vmatpush.bf16.msra.mxu0 0
        %2557 = vmatpush.bf16.msra.mxu0 0
        %2558 = vmatpush.bf16.msra.mxu0 0
        %2559 = vmatpush.bf16.msra.mxu0 0
        %2560 = vmatpush.bf16.msra.mxu0 %v2552
        %2561 = vmatpush.bf16.msra.mxu0 %v2518
        %2562 = vmatmul.bf16.gmra.mxu0 %v2522
        %v2563 = vpop.f32.mrf.mxu0
        %v2564 = vadd.f32 0.0, %v2563
        %v2565 = vpop.f32.mrf.mxu0
        %v2566 = vadd.f32 0.0, %v2565
        %2567 = vmatmul.bf16.gmra.mxu0 %v2525
        %v2568 = vpop.f32.mrf.mxu0
        %v2569 = vadd.f32 0.0, %v2568
        %v2570 = vpop.f32.mrf.mxu0
        %v2571 = vadd.f32 0.0, %v2570
        %2572 = vmatmul.bf16.gmra.mxu0 %v2528
        %v2573 = vpop.f32.mrf.mxu0
        %v2574 = vadd.f32 0.0, %v2573
        %v2575 = vpop.f32.mrf.mxu0
        %v2576 = vadd.f32 0.0, %v2575
        %2577 = vmatmul.bf16.gmra.mxu0 %v2531
        %v2578 = vpop.f32.mrf.mxu0
        %v2579 = vadd.f32 0.0, %v2578
        %v2580 = vpop.f32.mrf.mxu0
        %v2581 = vadd.f32 0.0, %v2580
        %2582 = vmatmul.bf16.gmra.mxu0 %v2534
        %v2583 = vpop.f32.mrf.mxu0
        %v2584 = vadd.f32 0.0, %v2583
        %v2585 = vpop.f32.mrf.mxu0
        %v2586 = vadd.f32 0.0, %v2585
        %2587 = vmatmul.bf16.gmra.mxu0 %v2537
        %v2588 = vpop.f32.mrf.mxu0
        %v2589 = vadd.f32 0.0, %v2588
        %v2590 = vpop.f32.mrf.mxu0
        %v2591 = vadd.f32 0.0, %v2590
        %2592 = vmatmul.bf16.gmra.mxu0 %v2540
        %v2593 = vpop.f32.mrf.mxu0
        %v2594 = vadd.f32 0.0, %v2593
        %v2595 = vpop.f32.mrf.mxu0
        %v2596 = vadd.f32 0.0, %v2595
        %2597 = vmatmul.bf16.gmra.mxu0 %v2543
        %v2598 = vpop.f32.mrf.mxu0
        %v2599 = vadd.f32 0.0, %v2598
        %v2600 = vpop.f32.mrf.mxu0
        %v2601 = vadd.f32 0.0, %v2600
        %2602 = vmatmul.bf16.gmra.mxu0 %v2546
        %v2603 = vpop.f32.mrf.mxu0
        %v2604 = vadd.f32 0.0, %v2603
        %v2605 = vpop.f32.mrf.mxu0
        %v2606 = vadd.f32 0.0, %v2605
        %2607 = vmatmul.bf16.gmra.mxu0 %v2549
        %v2608 = vpop.f32.mrf.mxu0
        %v2609 = vadd.f32 0.0, %v2608
        %v2610 = vpop.f32.mrf.mxu0
        %v2611 = vadd.f32 0.0, %v2610
        %2612 = vdwg.mxu0
        %v2613 = vld [vmem:[#allocation2] sm:$0xff]
        %v2614 = vld [vmem:[#allocation2 + $0x8] sm:$0xff]
        %v2615 = vld [vmem:[#allocation2 + $0x10] sm:$0xff]
        %v2616 = vld [vmem:[#allocation2 + $0x18] sm:$0xff]
        %v2617 = vld [vmem:[#allocation2 + $0x20] sm:$0xff]
        %v2618 = vld [vmem:[#allocation2 + $0x28] sm:$0xff]
        %v2619 = vld [vmem:[#allocation2 + $0x30] sm:$0xff]
        %v2620 = vld [vmem:[#allocation2 + $0x38] sm:$0xff]
        %v2621 = vld [vmem:[#allocation2 + $0x40] sm:$0xff]
        %v2622 = vld [vmem:[#allocation2 + $0x48] sm:$0xff]
        %v2623 = vld [vmem:[#allocation2 + $0x50] sm:$0xff]
        %v2624 = vld [vmem:[#allocation2 + $0x58] sm:$0xff]
        %v2625 = vld [vmem:[#allocation2 + $0x60] sm:$0xff]
        %v2626 = vld [vmem:[#allocation2 + $0x68] sm:$0xff]
        %v2627 = vld [vmem:[#allocation2 + $0x70] sm:$0xff]
        %v2628 = vld [vmem:[#allocation2 + $0x78] sm:$0xff]
        %v2629 = vld [vmem:[#allocation2 + $0x80] sm:$0xff]
        %v2630 = vld [vmem:[#allocation2 + $0x88] sm:$0xff]
        %v2631 = vld [vmem:[#allocation2 + $0x90] sm:$0xff]
        %v2632 = vld [vmem:[#allocation2 + $0x98] sm:$0xff]
        %v2633 = vadd.f32 %v2613, %v2564
        %v2634 = vadd.f32 %v2614, %v2566
        %v2635 = vadd.f32 %v2615, %v2569
        %v2636 = vadd.f32 %v2616, %v2571
        %v2637 = vadd.f32 %v2617, %v2574
        %v2638 = vadd.f32 %v2618, %v2576
        %v2639 = vadd.f32 %v2619, %v2579
        %v2640 = vadd.f32 %v2620, %v2581
        %v2641 = vadd.f32 %v2621, %v2584
        %v2642 = vadd.f32 %v2622, %v2586
        %v2643 = vadd.f32 %v2623, %v2589
        %v2644 = vadd.f32 %v2624, %v2591
        %v2645 = vadd.f32 %v2625, %v2594
        %v2646 = vadd.f32 %v2626, %v2596
        %v2647 = vadd.f32 %v2627, %v2599
        %v2648 = vadd.f32 %v2628, %v2601
        %v2649 = vadd.f32 %v2629, %v2604
        %v2650 = vadd.f32 %v2630, %v2606
        %v2651 = vadd.f32 %v2631, %v2609
        %v2652 = vadd.f32 %v2632, %v2611
        %2653 = vst [vmem:[#allocation2] sm:$0xff] %v2633
        %2654 = vst [vmem:[#allocation2 + $0x8] sm:$0xff] %v2634
        %2655 = vst [vmem:[#allocation2 + $0x10] sm:$0xff] %v2635
        %2656 = vst [vmem:[#allocation2 + $0x18] sm:$0xff] %v2636
        %2657 = vst [vmem:[#allocation2 + $0x20] sm:$0xff] %v2637
        %2658 = vst [vmem:[#allocation2 + $0x28] sm:$0xff] %v2638
        %2659 = vst [vmem:[#allocation2 + $0x30] sm:$0xff] %v2639
        %2660 = vst [vmem:[#allocation2 + $0x38] sm:$0xff] %v2640
        %2661 = vst [vmem:[#allocation2 + $0x40] sm:$0xff] %v2641
        %2662 = vst [vmem:[#allocation2 + $0x48] sm:$0xff] %v2642
        %2663 = vst [vmem:[#allocation2 + $0x50] sm:$0xff] %v2643
        %2664 = vst [vmem:[#allocation2 + $0x58] sm:$0xff] %v2644
        %2665 = vst [vmem:[#allocation2 + $0x60] sm:$0xff] %v2645
        %2666 = vst [vmem:[#allocation2 + $0x68] sm:$0xff] %v2646
        %2667 = vst [vmem:[#allocation2 + $0x70] sm:$0xff] %v2647
        %2668 = vst [vmem:[#allocation2 + $0x78] sm:$0xff] %v2648
        %2669 = vst [vmem:[#allocation2 + $0x80] sm:$0xff] %v2649
        %2670 = vst [vmem:[#allocation2 + $0x88] sm:$0xff] %v2650
        %2671 = vst [vmem:[#allocation2 + $0x90] sm:$0xff] %v2651
        %2672 = vst [vmem:[#allocation2 + $0x98] sm:$0xff] %v2652
        %v2673 = vld [vmem:[#allocation2] sm:$0xff]
        %v2674 = vld [vmem:[#allocation2 + $0x8] sm:$0xff]
        %v2675 = vld [vmem:[#allocation2 + $0x10] sm:$0xff]
        %v2676 = vld [vmem:[#allocation2 + $0x18] sm:$0xff]
        %v2677 = vld [vmem:[#allocation2 + $0x20] sm:$0xff]
        %v2678 = vld [vmem:[#allocation2 + $0x28] sm:$0xff]
        %v2679 = vld [vmem:[#allocation2 + $0x30] sm:$0xff]
        %v2680 = vld [vmem:[#allocation2 + $0x38] sm:$0xff]
        %v2681 = vld [vmem:[#allocation2 + $0x40] sm:$0xff]
        %v2682 = vld [vmem:[#allocation2 + $0x48] sm:$0xff]
        %v2683 = vld [vmem:[#allocation2 + $0x50] sm:$0xff]
        %v2684 = vld [vmem:[#allocation2 + $0x58] sm:$0xff]
        %v2685 = vld [vmem:[#allocation2 + $0x60] sm:$0xff]
        %v2686 = vld [vmem:[#allocation2 + $0x68] sm:$0xff]
        %v2687 = vld [vmem:[#allocation2 + $0x70] sm:$0xff]
        %v2688 = vld [vmem:[#allocation2 + $0x78] sm:$0xff]
        %v2689 = vld [vmem:[#allocation2 + $0x80] sm:$0xff]
        %v2690 = vld [vmem:[#allocation2 + $0x88] sm:$0xff]
        %v2691 = vld [vmem:[#allocation2 + $0x90] sm:$0xff]
        %v2692 = vld [vmem:[#allocation2 + $0x98] sm:$0xff]
        %v2693 = vld [vmem:[%s251] sm:$0x1]
        %v2695 = vperm.slane %v2693, 0
        %v2697 = vmul.f32 %v2673, %v2695
        %v2698 = vmul.f32 %v2674, %v2695
        %v2699 = vmul.f32 %v2675, %v2695
        %v2700 = vmul.f32 %v2676, %v2695
        %v2701 = vmul.f32 %v2677, %v2695
        %v2702 = vmul.f32 %v2678, %v2695
        %v2703 = vmul.f32 %v2679, %v2695
        %v2704 = vmul.f32 %v2680, %v2695
        %v2705 = vmul.f32 %v2681, %v2695
        %v2706 = vmul.f32 %v2682, %v2695
        %v2707 = vmul.f32 %v2683, %v2695
        %v2708 = vmul.f32 %v2684, %v2695
        %v2709 = vmul.f32 %v2685, %v2695
        %v2710 = vmul.f32 %v2686, %v2695
        %v2711 = vmul.f32 %v2687, %v2695
        %v2712 = vmul.f32 %v2688, %v2695
        %v2713 = vmul.f32 %v2689, %v2695
        %v2714 = vmul.f32 %v2690, %v2695
        %v2715 = vmul.f32 %v2691, %v2695
        %v2716 = vmul.f32 %v2692, %v2695
        %v2717 = vld [vmem:[%s254] sm:$0x1]
        %v2719 = vperm.slane %v2717, 0
        %v2721 = vadd.f32 %v2697, %v2719
        %v2722 = vadd.f32 %v2698, %v2719
        %v2723 = vadd.f32 %v2699, %v2719
        %v2724 = vadd.f32 %v2700, %v2719
        %v2725 = vadd.f32 %v2701, %v2719
        %v2726 = vadd.f32 %v2702, %v2719
        %v2727 = vadd.f32 %v2703, %v2719
        %v2728 = vadd.f32 %v2704, %v2719
        %v2729 = vadd.f32 %v2705, %v2719
        %v2730 = vadd.f32 %v2706, %v2719
        %v2731 = vadd.f32 %v2707, %v2719
        %v2732 = vadd.f32 %v2708, %v2719
        %v2733 = vadd.f32 %v2709, %v2719
        %v2734 = vadd.f32 %v2710, %v2719
        %v2735 = vadd.f32 %v2711, %v2719
        %v2736 = vadd.f32 %v2712, %v2719
        %v2737 = vadd.f32 %v2713, %v2719
        %v2738 = vadd.f32 %v2714, %v2719
        %v2739 = vadd.f32 %v2715, %v2719
        %v2740 = vadd.f32 %v2716, %v2719
        %v2741 = vmax.f32 %v2721, 0.0
        %v2742 = vmax.f32 %v2722, 0.0
        %v2743 = vmax.f32 %v2723, 0.0
        %v2744 = vmax.f32 %v2724, 0.0
        %v2745 = vmax.f32 %v2725, 0.0
        %v2746 = vmax.f32 %v2726, 0.0
        %v2747 = vmax.f32 %v2727, 0.0
        %v2748 = vmax.f32 %v2728, 0.0
        %v2749 = vmax.f32 %v2729, 0.0
        %v2750 = vmax.f32 %v2730, 0.0
        %v2751 = vmax.f32 %v2731, 0.0
        %v2752 = vmax.f32 %v2732, 0.0
        %v2753 = vmax.f32 %v2733, 0.0
        %v2754 = vmax.f32 %v2734, 0.0
        %v2755 = vmax.f32 %v2735, 0.0
        %v2756 = vmax.f32 %v2736, 0.0
        %v2757 = vmax.f32 %v2737, 0.0
        %v2758 = vmax.f32 %v2738, 0.0
        %v2759 = vmax.f32 %v2739, 0.0
        %v2760 = vmax.f32 %v2740, 0.0
        %v2761 = vpack.c.bf16 %v2741, %v2741
        %v2762 = vpack.c.bf16 %v2742, %v2742
        %v2763 = vpack.c.bf16 %v2743, %v2743
        %v2764 = vpack.c.bf16 %v2744, %v2744
        %v2765 = vpack.c.bf16 %v2745, %v2745
        %v2766 = vpack.c.bf16 %v2746, %v2746
        %v2767 = vpack.c.bf16 %v2747, %v2747
        %v2768 = vpack.c.bf16 %v2748, %v2748
        %v2769 = vpack.c.bf16 %v2749, %v2749
        %v2770 = vpack.c.bf16 %v2750, %v2750
        %v2771 = vpack.c.bf16 %v2751, %v2751
        %v2772 = vpack.c.bf16 %v2752, %v2752
        %v2773 = vpack.c.bf16 %v2753, %v2753
        %v2774 = vpack.c.bf16 %v2754, %v2754
        %v2775 = vpack.c.bf16 %v2755, %v2755
        %v2776 = vpack.c.bf16 %v2756, %v2756
        %v2777 = vpack.c.bf16 %v2757, %v2757
        %v2778 = vpack.c.bf16 %v2758, %v2758
        %v2779 = vpack.c.bf16 %v2759, %v2759
        %v2780 = vpack.c.bf16 %v2760, %v2760
        %2781 = vst [vmem:[%s239] sm:$0xf] %v2761
        %2782 = vst [vmem:[%s239 + $0x4] sm:$0xf] %v2762
        %2783 = vst [vmem:[%s239 + $0x8] sm:$0xf] %v2763
        %2784 = vst [vmem:[%s239 + $0xc] sm:$0xf] %v2764
        %2785 = vst [vmem:[%s239 + $0x10] sm:$0xf] %v2765
        %2786 = vst [vmem:[%s239 + $0x14] sm:$0xf] %v2766
        %2787 = vst [vmem:[%s239 + $0x18] sm:$0xf] %v2767
        %2788 = vst [vmem:[%s239 + $0x1c] sm:$0xf] %v2768
        %2789 = vst [vmem:[%s239 + $0x20] sm:$0xf] %v2769
        %2790 = vst [vmem:[%s239 + $0x24] sm:$0xf] %v2770
        %2791 = vst [vmem:[%s239 + $0x28] sm:$0xf] %v2771
        %2792 = vst [vmem:[%s239 + $0x2c] sm:$0xf] %v2772
        %2793 = vst [vmem:[%s239 + $0x30] sm:$0xf] %v2773
        %2794 = vst [vmem:[%s239 + $0x34] sm:$0xf] %v2774
        %2795 = vst [vmem:[%s239 + $0x38] sm:$0xf] %v2775
        %2796 = vst [vmem:[%s239 + $0x3c] sm:$0xf] %v2776
        %2797 = vst [vmem:[%s239 + $0x40] sm:$0xf] %v2777
        %2798 = vst [vmem:[%s239 + $0x44] sm:$0xf] %v2778
        %2799 = vst [vmem:[%s239 + $0x48] sm:$0xf] %v2779
        %2800 = vst [vmem:[%s239 + $0x4c] sm:$0xf] %v2780
        %s2801 = sand.u32 %s144, 1
        %s2802 = scalar_lea.sflag [#allocation4], %s2801
        %s2803 = sand.u32 %s144, 1
        %s2804 = smul.addr %s2803, 80
        %s2805 = scalar_lea.vmem [#allocation3], %s2804
        // Predicated region
        $region37: #{tpu_custom_call.1} parent=35 // pred_check
          %p2806 = pneg %p154
        $region38: #{tpu_custom_call.1} parent=35 // pred_check_branch
          %2808 = sbr.rel (%p2806) target = $region40
        $region39: #{tpu_custom_call.1} parent=35 // pred_region
          %2810 = vsyncadd %s2802, 0
          %s2811 = smul.addr %s22, 20
          %s2812 = sadd.s32 %s23, %s2811
          %s2813 = smul.addr %s2812, 4
          %s2814 = scalar_lea.hbm %s4, %s2813
          %s2815 = sshll.u32 %s2805, 4
          %s2816 = int_to_ptr.vmem [resolvable:$true] %s2815
          %s2817 = sshll.u32 %s2814, 4
          %s2818 = int_to_ptr.hbm [resolvable:$true] %s2817
          %2823 = dma.vmem_to_hbm [thread:$0]  %s2816, 1280, %s2818, %s2802, 64, 64, 4
        $region40: #{tpu_custom_call.1} parent=35 // pred_fallthru
          _
      $region36: #{tpu_custom_call.1} parent=5 // pred_fallthru
        _
      %p2824 = scmp.le.s32.totalorder 2, %s13
      // Predicated region
      $region41: #{tpu_custom_call.1} parent=5 // pred_check
        %p2825 = pneg %p2824
      $region42: #{tpu_custom_call.1} parent=5 // pred_check_branch
        %2827 = sbr.rel (%p2825) target = $region44
      $region43: #{tpu_custom_call.1} parent=5 // pred_region
        %s2828 = ssub.s32 %s13, 2
        // Predicated region
        $region45: #{tpu_custom_call.1} parent=43 // pred_check
          %p2829 = pneg %p160
        $region46: #{tpu_custom_call.1} parent=43 // pred_check_branch
          %2831 = sbr.rel (%p2829) target = $region48
        $region47: #{tpu_custom_call.1} parent=43 // pred_region
          %s2832 = sand.u32 %s145, 1
          %s2833 = scalar_lea.sflag [#allocation4], %s2832
          %s2834 = sand.u32 %s145, 1
          %s2835 = smul.addr %s2834, 80
          %s2836 = scalar_lea.vmem [#allocation3], %s2835
          %2838 = dma.done %s2833, 1280
        $region48: #{tpu_custom_call.1} parent=43 // pred_fallthru
          _
      $region44: #{tpu_custom_call.1} parent=5 // pred_fallthru
        _
    $region6: #{tpu_custom_call.1} parent=1 // loop_footer
      %s17 = sadd.s32 1, %s13
    $region7: #{tpu_custom_call.1} parent=1 // loop_footer_branch
      %12 = sbr.rel target = $region3
    $region8: #{tpu_custom_call.1} parent=1 // loop_exit
      _
    %2839 = vsyncpa [#allocation4], 1
    %s2840 = scalar_lea.sflag [#allocation4], 1
    %2841 = vsyncpa %s2840, 1

</llo_original>
